<compile_context>
chip_gen: v7x
topology: tpu7x:2x2x1
jax: 0.10.0
libtpu: 0.0.40
codegen_flags: <defaults>
</compile_context>

<pallas_src>
import functools

import jax
import jax.numpy as jnp
from jax.experimental import pallas as pl
from jax.experimental.pallas import tpu as pltpu


def _round_up(x, m):
    return (x + m - 1) // m * m


def _rsage_kernel(a_ref, invdeg_ref, xw_ref, b_ref, o_ref, *,
                  use_relu, inv_views, compute_dtype):
    """Grid = (row_tiles, views); the view axis (last) is the reduction axis.

    a_ref:      (tm, N)      int8  unscaled (A_v + I) row tile (exact small ints)
    invdeg_ref: (tm, 1)      f32   1 / (deg_v + 1) row scale for this tile
    xw_ref:     (V, N, Dp)   bf16  X @ W per view, VMEM-resident (const block idx)
    b_ref:      (V, 1, Dp)   f32   bias per view, VMEM-resident
    o_ref:      (tm, Dp)     f32   view-resident accumulator (block idx ignores v)
    """
    v = pl.program_id(1)

    # MXU: exact integer adjacency cast on the fly to bf16, f32 accumulation.
    a = a_ref[...].astype(compute_dtype)
    h = jnp.dot(a, xw_ref[v], preferred_element_type=jnp.float32)
    # Exact f32 row normalization, then bias (+ ReLU).
    h = h * invdeg_ref[...]
    h = h + b_ref[v]
    if use_relu:
        h = jnp.maximum(h, 0.0)

    @pl.when(v == 0)
    def _():
        o_ref[...] = h            # first view: write directly (skip zero-init pass)

    @pl.when(v > 0)
    def _():
        o_ref[...] += h

    @pl.when(v == pl.num_programs(1) - 1)
    def _():
        o_ref[...] = o_ref[...] * inv_views


def prepare_rsage_graphs(adj_stack, *, row_block=256):
    """One-time per-graph preprocessing, hoisted out of the hot forward path.

    adj_stack: [V, N, N] 0/1 adjacency per view (float).
    Returns:
      a_si:    [V, n_pad, N] int8  -- (A_v + I), exact small integers, row-padded
      inv_deg: [V, n_pad, 1] f32   -- 1 / rowsum(A_v + I), row-padded
      tm:      row tile size used for padding (multiple of 8/32, divides n_pad)
    """
    V, N, _ = adj_stack.shape
    tm = min(row_block, _round_up(N, 32))      # int8 sublane packing friendly
    n_pad = _round_up(N, tm)

    eye = jnp.eye(N, dtype=adj_stack.dtype)
    a_plus = adj_stack + eye[None]             # values in {0,1,2}: exact in int8
    deg = a_plus.sum(axis=2, keepdims=True)
    inv_deg = 1.0 / jnp.maximum(deg, 1.0)

    a_si = jnp.pad(a_plus.astype(jnp.int8), ((0, 0), (0, n_pad - N), (0, 0)))
    inv_deg = jnp.pad(inv_deg.astype(jnp.float32), ((0, 0), (0, n_pad - N), (0, 0)))
    return a_si, inv_deg, tm


def rsage_layer(a_si, inv_deg, X, W_stack, b_stack, *, n_nodes, tm,
                activation="relu", compute_dtype=jnp.bfloat16):
    """a_si: [V, n_pad, N] int8 (A+I); inv_deg: [V, n_pad, 1] f32; X: [N, Din];
    W_stack: [V, Din, Dout]; b_stack: [V, Dout]  ->  [n_nodes, Dout]."""
    if activation is None:
        use_relu = False
    elif activation == "relu":
        use_relu = True
    else:
        raise ValueError(f"unsupported activation: {activation!r}")

    V, n_pad, N = a_si.shape
    Dout = W_stack.shape[2]

    # Hoisted out of the kernel: X @ W_v is a terrible MXU shape (K = Din) and
    # would be redundantly recomputed once per row tile inside the kernel.
    xw = jnp.einsum("nd,vdo->vno", X.astype(jnp.float32), W_stack.astype(jnp.float32))

    # Lane-dense output: pad the feature dim up to a multiple of 128.
    d_pad = _round_up(max(Dout, 128), 128)
    xw = jnp.pad(xw, ((0, 0), (0, 0), (0, d_pad - Dout))).astype(compute_dtype)
    b3 = jnp.pad(b_stack.astype(jnp.float32), ((0, 0), (0, d_pad - Dout)))
    b3 = b3.reshape(V, 1, d_pad)

    grid = (n_pad // tm, V)

    # Explicit VMEM budget (per review): int8 A double buffer + resident XW/bias
    # + f32 output tile; generous 1.5x headroom, clamped for v7x's 64 MiB/TC.
    vmem_bytes = (2 * tm * N * 1            # A tiles (int8, double buffered)
                  + 2 * tm * 4              # inv_deg tiles
                  + 2 * V * N * d_pad * 2   # resident XW (budget 2x for safety)
                  + 2 * V * d_pad * 4       # resident bias
                  + 2 * tm * d_pad * 4)     # output accumulator tile
    vmem_limit = int(min(max(vmem_bytes * 3 // 2, 32 * 1024 * 1024),
                         60 * 1024 * 1024))

    kernel = functools.partial(_rsage_kernel, use_relu=use_relu,
                               inv_views=1.0 / V, compute_dtype=compute_dtype)

    out = pl.pallas_call(
        kernel,
        out_shape=jax.ShapeDtypeStruct((n_pad, d_pad), jnp.float32),
        grid_spec=pltpu.PrefetchScalarGridSpec(
            num_scalar_prefetch=0,
            grid=grid,
            in_specs=[
                # (A_v + I) row tile (tm, N), int8; leading view dim squeezed.
                # (If DMA latency becomes exposed, sweep pipeline_mode=pl.Buffered(3).)
                pl.BlockSpec((pl.Squeezed(), tm, N), lambda i, v: (v, i, 0)),
                # 1/(deg+1) row-scale tile (tm, 1), f32.
                pl.BlockSpec((pl.Squeezed(), tm, 1), lambda i, v: (v, i, 0)),
                # XW for ALL views, constant block index -> DMA'd once, VMEM-resident.
                pl.BlockSpec((V, N, d_pad), lambda i, v: (0, 0, 0)),
                # bias for ALL views, VMEM-resident.
                pl.BlockSpec((V, 1, d_pad), lambda i, v: (0, 0, 0)),
            ],
            # Output block index ignores v -> view-resident f32 accumulator.
            out_specs=pl.BlockSpec((tm, d_pad), lambda i, v: (i, 0)),
        ),
        compiler_params=pltpu.CompilerParams(
            dimension_semantics=("parallel", "arbitrary"),
            vmem_limit_bytes=vmem_limit,
        ),
    )(a_si, inv_deg, xw, b3)

    return out[:n_nodes, :Dout].astype(X.dtype)


if __name__ == "__main__":
    key = jax.random.PRNGKey(0)

    views = ("ppi", "coexpr", "pathway")
    V = len(views)
    N = 512          # number of graph nodes (2 even row tiles of 256)
    in_dim = 16
    out_dim = 32

    k_adj, k_x, k_w, k_b = jax.random.split(key, 4)

    # deterministic random undirected graphs, one per view
    raw = jax.random.uniform(k_adj, (V, N, N))
    adj = (raw + jnp.swapaxes(raw, 1, 2) > 1.2).astype(jnp.float32)

    # one-time graph preprocessing (int8 A+I, f32 1/(deg+1)); reused across calls
    a_si, inv_deg, tm = prepare_rsage_graphs(adj, row_block=256)

    X = jax.random.normal(k_x, (N, in_dim), dtype=jnp.float32)

    # deterministic parameter init (Glorot-ish scaling), one SAGEConv per view
    W_stack = jax.random.normal(k_w, (V, in_dim, out_dim), dtype=jnp.float32) * (
        1.0 / jnp.sqrt(jnp.float32(in_dim))
    )
    b_stack = jax.random.normal(k_b, (V, out_dim), dtype=jnp.float32) * 0.01

    fwd = jax.jit(functools.partial(rsage_layer, n_nodes=N, tm=tm,
                                    activation="relu"))
    out = jax.block_until_ready(fwd(a_si, inv_deg, X, W_stack, b_stack))

    # cross-check against a plain-JAX f32 reference of the same forward
    eye = jnp.eye(N, dtype=jnp.float32)
    ref_views = []
    for v in range(V):
        a_plus = adj[v] + eye
        deg = a_plus.sum(axis=1, keepdims=True)
        A_hat = a_plus / jnp.maximum(deg, 1.0)
        ref_views.append(jax.nn.relu(A_hat @ X @ W_stack[v] + b_stack[v][None, :]))
    ref = jnp.mean(jnp.stack(ref_views), axis=0)

    assert out.shape == (N, out_dim)
    # XW is fed to the MXU in bf16 -> relaxed tolerance vs the f32 reference.
    assert jnp.allclose(out, ref, atol=2e-2, rtol=2e-2), float(
        jnp.max(jnp.abs(out - ref))
    )

    print("KERNEL_OK")
</pallas_src>

<mosaic_0001>
module attributes {stable_mosaic.version = 11 : i64} {
  func.func @_rsage_kernel(%arg0: i32, %arg1: i32, %arg2: memref<1x256x512xi8, #tpu.memory_space<vmem>>, %arg3: memref<1x256x1xf32, #tpu.memory_space<vmem>>, %arg4: memref<3x512x128xbf16, #tpu.memory_space<vmem>>, %arg5: memref<3x1x128xf32, #tpu.memory_space<vmem>>, %arg6: memref<256x128xf32, #tpu.memory_space<vmem>>) attributes {dimension_semantics = [#tpu.dimension_semantics<parallel>, #tpu.dimension_semantics<arbitrary>], iteration_bounds = array<i64: 2, 3>, scalar_prefetch = 0 : i64, scratch_operands = 0 : i64, tpu.core_type = #tpu.core_type<tc>, window_params = [{transform_indices = @transform_0, window_bounds = array<i64: 1, 256, 512>}, {transform_indices = @transform_1, window_bounds = array<i64: 1, 256, 1>}, {pipeline_mode = #tpu.pipeline_mode<synchronous>, transform_indices = @transform_2, window_bounds = array<i64: 3, 512, 128>}, {pipeline_mode = #tpu.pipeline_mode<synchronous>, transform_indices = @transform_3, window_bounds = array<i64: 3, 1, 128>}, {transform_indices = @transform_4, window_bounds = array<i64: 256, 128>}]} {
    %c0 = arith.constant 0 : index
    %c0_0 = arith.constant 0 : index
    %c0_1 = arith.constant 0 : index
    %0 = vector.load %arg2[%c0, %c0_0, %c0_1] : memref<1x256x512xi8, #tpu.memory_space<vmem>>, vector<1x256x512xi8>
    %1 = vector.shape_cast %0 : vector<1x256x512xi8> to vector<256x512xi8>
    %2 = arith.sitofp %1 : vector<256x512xi8> to vector<256x512xbf16>
    %3 = arith.index_cast %arg1 : i32 to index
    %c0_2 = arith.constant 0 : index
    %c0_3 = arith.constant 0 : index
    %4 = vector.load %arg4[%3, %c0_2, %c0_3] : memref<3x512x128xbf16, #tpu.memory_space<vmem>>, vector<1x512x128xbf16>
    %5 = vector.shape_cast %4 : vector<1x512x128xbf16> to vector<512x128xbf16>
    %cst = arith.constant dense<0.000000e+00> : vector<256x128xf32>
    %6 = tpu.matmul %2, %5, %cst {dimension_numbers = #tpu.dot_dimension_numbers<[1], [0], [0], [1], [0, 0, 1, 1], [], []>} : vector<256x512xbf16>, vector<512x128xbf16>, vector<256x128xf32> -> vector<256x128xf32>
    %c0_4 = arith.constant 0 : index
    %c0_5 = arith.constant 0 : index
    %c0_6 = arith.constant 0 : index
    %7 = vector.load %arg3[%c0_4, %c0_5, %c0_6] : memref<1x256x1xf32, #tpu.memory_space<vmem>>, vector<1x256x1xf32>
    %8 = vector.shape_cast %7 : vector<1x256x1xf32> to vector<256x1xf32>
    %9 = vector.broadcast %8 : vector<256x1xf32> to vector<256x128xf32>
    %10 = arith.mulf %6, %9 : vector<256x128xf32>
    %11 = arith.index_cast %arg1 : i32 to index
    %c0_7 = arith.constant 0 : index
    %c0_8 = arith.constant 0 : index
    %12 = vector.load %arg5[%11, %c0_7, %c0_8] : memref<3x1x128xf32, #tpu.memory_space<vmem>>, vector<1x1x128xf32>
    %13 = vector.shape_cast %12 : vector<1x1x128xf32> to vector<1x128xf32>
    %14 = vector.broadcast %13 : vector<1x128xf32> to vector<256x128xf32>
    %15 = arith.addf %10, %14 : vector<256x128xf32>
    %cst_9 = arith.constant 0.000000e+00 : f32
    %16 = vector.broadcast %cst_9 : f32 to vector<256x128xf32>
    %17 = arith.maximumf %15, %16 : vector<256x128xf32>
    %c0_i32 = arith.constant 0 : i32
    %18 = arith.cmpi eq, %arg1, %c0_i32 : i32
    %19 = arith.extui %18 : i1 to i32
    %c0_i32_10 = arith.constant 0 : i32
    %20 = arith.cmpi ne, %19, %c0_i32_10 : i32
    scf.if %20 {
      %c0_14 = arith.constant 0 : index
      %c0_15 = arith.constant 0 : index
      %27 = vector.load %arg6[%c0_14, %c0_15] : memref<256x128xf32, #tpu.memory_space<vmem>>, vector<256x128xf32>
      tpu.vector_store %arg6[%c0_14, %c0_15], %17 {strides = array<i32>} : memref<256x128xf32, #tpu.memory_space<vmem>>, vector<256x128xf32>,
    } else {
    }
    %c0_i32_11 = arith.constant 0 : i32
    %21 = arith.cmpi sgt, %arg1, %c0_i32_11 : i32
    %22 = arith.extui %21 : i1 to i32
    %c0_i32_12 = arith.constant 0 : i32
    %23 = arith.cmpi ne, %22, %c0_i32_12 : i32
    scf.if %23 {
      %c0_14 = arith.constant 0 : index
      %c0_15 = arith.constant 0 : index
      %27 = vector.load %arg6[%c0_14, %c0_15] : memref<256x128xf32, #tpu.memory_space<vmem>>, vector<256x128xf32>
      %28 = arith.addf %27, %17 : vector<256x128xf32>
      %c0_16 = arith.constant 0 : index
      %c0_17 = arith.constant 0 : index
      %29 = vector.load %arg6[%c0_16, %c0_17] : memref<256x128xf32, #tpu.memory_space<vmem>>, vector<256x128xf32>
      tpu.vector_store %arg6[%c0_16, %c0_17], %28 {strides = array<i32>} : memref<256x128xf32, #tpu.memory_space<vmem>>, vector<256x128xf32>,
    } else {
    }
    %c2_i32 = arith.constant 2 : i32
    %24 = arith.cmpi eq, %arg1, %c2_i32 : i32
    %25 = arith.extui %24 : i1 to i32
    %c0_i32_13 = arith.constant 0 : i32
    %26 = arith.cmpi ne, %25, %c0_i32_13 : i32
    scf.if %26 {
      %c0_14 = arith.constant 0 : index
      %c0_15 = arith.constant 0 : index
      %27 = vector.load %arg6[%c0_14, %c0_15] : memref<256x128xf32, #tpu.memory_space<vmem>>, vector<256x128xf32>
      %cst_16 = arith.constant 0.333333343 : f32
      %28 = vector.broadcast %cst_16 : f32 to vector<256x128xf32>
      %29 = arith.mulf %27, %28 : vector<256x128xf32>
      %c0_17 = arith.constant 0 : index
      %c0_18 = arith.constant 0 : index
      %30 = vector.load %arg6[%c0_17, %c0_18] : memref<256x128xf32, #tpu.memory_space<vmem>>, vector<256x128xf32>
      tpu.vector_store %arg6[%c0_17, %c0_18], %29 {strides = array<i32>} : memref<256x128xf32, #tpu.memory_space<vmem>>, vector<256x128xf32>,
    } else {
    }
    return
  }
  func.func @transform_0(%arg0: i32, %arg1: i32) -> (i32, i32, i32) {
    %c0_i32 = arith.constant 0 : i32
    %c0_i32_0 = arith.constant 0 : i32
    return %arg1, %arg0, %c0_i32 : i32, i32, i32
  }
  func.func @transform_1(%arg0: i32, %arg1: i32) -> (i32, i32, i32) {
    %c0_i32 = arith.constant 0 : i32
    %c0_i32_0 = arith.constant 0 : i32
    return %arg1, %arg0, %c0_i32 : i32, i32, i32
  }
  func.func @transform_2(%arg0: i32, %arg1: i32) -> (i32, i32, i32) {
    %c0_i32 = arith.constant 0 : i32
    %c0_i32_0 = arith.constant 0 : i32
    %c0_i32_1 = arith.constant 0 : i32
    %c0_i32_2 = arith.constant 0 : i32
    return %c0_i32, %c0_i32_0, %c0_i32_1 : i32, i32, i32
  }
  func.func @transform_3(%arg0: i32, %arg1: i32) -> (i32, i32, i32) {
    %c0_i32 = arith.constant 0 : i32
    %c0_i32_0 = arith.constant 0 : i32
    %c0_i32_1 = arith.constant 0 : i32
    %c0_i32_2 = arith.constant 0 : i32
    return %c0_i32, %c0_i32_0, %c0_i32_1 : i32, i32, i32
  }
  func.func @transform_4(%arg0: i32, %arg1: i32) -> (i32, i32) {
    %c0_i32 = arith.constant 0 : i32
    %c0_i32_0 = arith.constant 0 : i32
    return %arg0, %c0_i32 : i32, i32
  }
}

</mosaic_0001>

<llo_original>
// kernel: rsage_layer.1
$region0: #{rsage_layer.1}
  #allocation0 [shape = 'u32[]', space=smem, size = 0x4, offset = 0x4, fixed_abs, tag = 'smem constant byte address 0x4 - core index']
  #allocation1 [shape = 'u32[144,128]{1,0:T(1,128)}', space=vmem, size = 0x12000, scoped, tag = 'internal scratch']
  %s0 = inlined_call_operand.vmem [shape: s8[3,512,512], index: 0, kind: input, shape index: {}]
  %s1 = inlined_call_operand.vmem [shape: f32[3,512,1], index: 1, kind: input, shape index: {}]
  %s2 = inlined_call_operand.vmem [shape: bf16[3,512,128], index: 2, kind: input, shape index: {}]
  %s3 = inlined_call_operand.vmem [shape: f32[3,1,128], index: 3, kind: input, shape index: {}]
  %s4 = inlined_call_operand.vmem [shape: f32[512,128], index: 4, kind: output, shape index: {}]
  %s5 = sld [smem:[#allocation0]]
  $region61: #{rsage_layer.1} parent=0
    _
  %s7 = ssub.s32 1, %s5
  %s8 = scalar_select 0, %s7, %s5
  loop: start=0, step=1, limit=8
  $region2: #{rsage_layer.1} parent=0 // loop_pre_header
    _
  $region3: #{rsage_layer.1} parent=0 // loop_header
    %s10 = sphi 0, %s14
    %p11 = scmp.ge.s32.totalorder %s10, 8
    %s17 = sphi 0, %s29
    %s18 = sphi 0, %s25
    %s19 = sphi 0, %s17
    %s20 = sphi 0, %s18
    %s21 = sphi 0, %s19
    %s22 = sphi 0, %s20
    %s34 = sphi 0, %s36
    %s37 = sphi 0, %s34
    %s38 = sphi 0, %s37
    %s54 = sphi 0, %s38
    %s62 = sphi 0, %s64
    %s65 = sphi 0, %s62
    %s66 = sphi 0, %s65
    %s82 = sphi 0, %s66
    %s86 = sphi 0, %s86
    %s88 = sphi 0, %s86
    %s89 = sphi 0, %s88
    %s103 = sphi 0, %s89
    %s107 = sphi 0, %s107
    %s109 = sphi 0, %s107
    %s110 = sphi 0, %s109
    %s124 = sphi 0, %s110
    %s130 = sphi 0, %s132
    %s133 = sphi 0, %s130
    %s134 = sphi 0, %s133
    %s150 = sphi 0, %s134
  $region4: #{rsage_layer.1} parent=0 // loop_header_branch
    %13 = sbr.rel (%p11) target = $region8
  $region5: #{rsage_layer.1} parent=0 // loop_body
    %s15 = ssub.s32 %s10, 1
    %s16 = ssub.s32 %s10, 2
    %s23 = sadd.s32 1, %s18
    %p24 = scmp.ge.s32.totalorder %s23, 3
    %s25 = scalar_select %p24, 0, %s23
    %s26 = sadd.s32 1, %s17
    %s27 = scalar_select %p24, %s26, %s17
    %p28 = scmp.ge.s32.totalorder %s27, 2
    %s29 = scalar_select %p28, 0, %s27
    %s30 = ssub.s32 %s18, %s25
    %s31 = ssub.s32 %s17, %s29
    %s32 = sor.u32 %s30, %s31
    %p33 = scmp.eq.s32.totalorder %s32, 0
    %s35 = sadd.s32 %s34, 1
    %s36 = scalar_select %p33, %s34, %s35
    %p39 = pneg %p33
    %p40 = scmp.eq.s32.totalorder %s10, 5
    %p41 = por %p39, %p40
    %p42 = scmp.ne.s32.totalorder %s34, %s37
    %p43 = scmp.eq.s32.totalorder %s10, 0
    %p44 = por %p42, %p43
    %p45 = scmp.ne.s32.totalorder %s34, %s37
    %p46 = scmp.eq.s32.totalorder %s15, 5
    %p47 = por %p45, %p46
    %p48 = scmp.ne.s32.totalorder %s37, %s38
    %p49 = scmp.eq.s32.totalorder %s15, 0
    %p50 = por %p48, %p49
    %p51 = scmp.ne.s32.totalorder %s37, %s38
    %p52 = scmp.eq.s32.totalorder %s16, 5
    %p53 = por %p51, %p52
    %p55 = scmp.ne.s32.totalorder %s38, %s54
    %p56 = scmp.eq.s32.totalorder %s16, 0
    %p57 = por %p55, %p56
    %s58 = ssub.s32 %s18, %s25
    %s59 = ssub.s32 %s17, %s29
    %s60 = sor.u32 %s58, %s59
    %p61 = scmp.eq.s32.totalorder %s60, 0
    %s63 = sadd.s32 %s62, 1
    %s64 = scalar_select %p61, %s62, %s63
    %p67 = pneg %p61
    %p68 = scmp.eq.s32.totalorder %s10, 5
    %p69 = por %p67, %p68
    %p70 = scmp.ne.s32.totalorder %s62, %s65
    %p71 = scmp.eq.s32.totalorder %s10, 0
    %p72 = por %p70, %p71
    %p73 = scmp.ne.s32.totalorder %s62, %s65
    %p74 = scmp.eq.s32.totalorder %s15, 5
    %p75 = por %p73, %p74
    %p76 = scmp.ne.s32.totalorder %s65, %s66
    %p77 = scmp.eq.s32.totalorder %s15, 0
    %p78 = por %p76, %p77
    %p79 = scmp.ne.s32.totalorder %s65, %s66
    %p80 = scmp.eq.s32.totalorder %s16, 5
    %p81 = por %p79, %p80
    %p83 = scmp.ne.s32.totalorder %s66, %s82
    %p84 = scmp.eq.s32.totalorder %s16, 0
    %p85 = por %p83, %p84
    %s87 = sadd.s32 %s86, 1
    %p90 = scmp.eq.s32.totalorder %s10, 5
    %p91 = scmp.ne.s32.totalorder %s86, %s88
    %p92 = scmp.eq.s32.totalorder %s10, 0
    %p93 = por %p91, %p92
    %p94 = scmp.ne.s32.totalorder %s86, %s88
    %p95 = scmp.eq.s32.totalorder %s15, 5
    %p96 = por %p94, %p95
    %p97 = scmp.ne.s32.totalorder %s88, %s89
    %p98 = scmp.eq.s32.totalorder %s15, 0
    %p99 = por %p97, %p98
    %p100 = scmp.ne.s32.totalorder %s88, %s89
    %p101 = scmp.eq.s32.totalorder %s16, 5
    %p102 = por %p100, %p101
    %p104 = scmp.ne.s32.totalorder %s89, %s103
    %p105 = scmp.eq.s32.totalorder %s16, 0
    %p106 = por %p104, %p105
    %s108 = sadd.s32 %s107, 1
    %p111 = scmp.eq.s32.totalorder %s10, 5
    %p112 = scmp.ne.s32.totalorder %s107, %s109
    %p113 = scmp.eq.s32.totalorder %s10, 0
    %p114 = por %p112, %p113
    %p115 = scmp.ne.s32.totalorder %s107, %s109
    %p116 = scmp.eq.s32.totalorder %s15, 5
    %p117 = por %p115, %p116
    %p118 = scmp.ne.s32.totalorder %s109, %s110
    %p119 = scmp.eq.s32.totalorder %s15, 0
    %p120 = por %p118, %p119
    %p121 = scmp.ne.s32.totalorder %s109, %s110
    %p122 = scmp.eq.s32.totalorder %s16, 5
    %p123 = por %p121, %p122
    %p125 = scmp.ne.s32.totalorder %s110, %s124
    %p126 = scmp.eq.s32.totalorder %s16, 0
    %p127 = por %p125, %p126
    %s128 = ssub.s32 %s17, %s29
    %p129 = scmp.eq.s32.totalorder %s128, 0
    %s131 = sadd.s32 %s130, 1
    %s132 = scalar_select %p129, %s130, %s131
    %p135 = pneg %p129
    %p136 = scmp.eq.s32.totalorder %s10, 5
    %p137 = por %p135, %p136
    %p138 = scmp.ne.s32.totalorder %s130, %s133
    %p139 = scmp.eq.s32.totalorder %s10, 0
    %p140 = por %p138, %p139
    %p141 = scmp.ne.s32.totalorder %s130, %s133
    %p142 = scmp.eq.s32.totalorder %s15, 5
    %p143 = por %p141, %p142
    %p144 = scmp.ne.s32.totalorder %s133, %s134
    %p145 = scmp.eq.s32.totalorder %s15, 0
    %p146 = por %p144, %p145
    %p147 = scmp.ne.s32.totalorder %s133, %s134
    %p148 = scmp.eq.s32.totalorder %s16, 5
    %p149 = por %p147, %p148
    %p151 = scmp.ne.s32.totalorder %s134, %s150
    %p152 = scmp.eq.s32.totalorder %s16, 0
    %p153 = por %p151, %p152
    %p154 = scmp.le.s32.totalorder 1, %s10
    %p155 = scmp.lt.s32.totalorder %s10, 7
    %p156 = pnand %p154, %p155
    %p157 = pneg %p156
    // Predicated region
    $region9: #{rsage_layer.1} parent=5 // pred_check
      _
    $region10: #{rsage_layer.1} parent=5 // pred_check_branch
      %159 = sbr.rel (%p156) target = $region12
    $region11: #{rsage_layer.1} parent=5 // pred_region
      %s160 = ssub.s32 %s10, 1
      // Predicated region
      $region13: #{rsage_layer.1} parent=11 // pred_check
        %p161 = pneg %p99
      $region14: #{rsage_layer.1} parent=11 // pred_check_branch
        %163 = sbr.rel (%p161) target = $region16
      $region15: #{rsage_layer.1} parent=11 // pred_region
        _
      $region16: #{rsage_layer.1} parent=11 // pred_fallthru
        _
      // Predicated region
      $region17: #{rsage_layer.1} parent=11 // pred_check
        %p164 = pneg %p120
      $region18: #{rsage_layer.1} parent=11 // pred_check_branch
        %166 = sbr.rel (%p164) target = $region20
      $region19: #{rsage_layer.1} parent=11 // pred_region
        _
      $region20: #{rsage_layer.1} parent=11 // pred_fallthru
        _
    $region12: #{rsage_layer.1} parent=5 // pred_fallthru
      _
    %p167 = scmp.lt.s32.totalorder %s10, 6
    // Predicated region
    $region21: #{rsage_layer.1} parent=5 // pred_check
      %p168 = pneg %p167
    $region22: #{rsage_layer.1} parent=5 // pred_check_branch
      %170 = sbr.rel (%p168) target = $region24
    $region23: #{rsage_layer.1} parent=5 // pred_region
      // Predicated region
      $region25: #{rsage_layer.1} parent=23 // pred_check
        %p171 = pneg %p44
      $region26: #{rsage_layer.1} parent=23 // pred_check_branch
        %173 = sbr.rel (%p171) target = $region28
      $region27: #{rsage_layer.1} parent=23 // pred_region
        %s174 = smul.u32 8, %s17
        %p175 = scmp.lt.s32.totalorder %s18, 2
        %s176 = scalar_select %p175, %s18, 2
        %p177 = scmp.lt.s32.totalorder %s174, 15
        %s178 = scalar_select %p177, %s174, 15
        %s179 = smul.addr %s178, 4
        %s180 = smul.addr %s176, 64
        %s181 = sadd.s32 %s179, %s180
        %s182 = smul.addr %s181, 8
        %s183 = scalar_lea.vmem %s0, %s182
        %s184 = smul.u32 8, %s17
      $region28: #{rsage_layer.1} parent=23 // pred_fallthru
        _
      // Predicated region
      $region29: #{rsage_layer.1} parent=23 // pred_check
        %p185 = pneg %p72
      $region30: #{rsage_layer.1} parent=23 // pred_check_branch
        %187 = sbr.rel (%p185) target = $region32
      $region31: #{rsage_layer.1} parent=23 // pred_region
        %s188 = smul.u32 32, %s17
        %p189 = scmp.lt.s32.totalorder %s18, 2
        %s190 = scalar_select %p189, %s18, 2
        %p191 = scmp.lt.s32.totalorder %s188, 63
        %s192 = scalar_select %p191, %s188, 63
        %s193 = smul.addr %s190, 64
        %s194 = sadd.s32 %s192, %s193
        %s195 = smul.addr %s194, 8
        %s196 = scalar_lea.vmem %s1, %s195
        %s197 = smul.u32 32, %s17
      $region32: #{rsage_layer.1} parent=23 // pred_fallthru
        _
    $region24: #{rsage_layer.1} parent=5 // pred_fallthru
      _
    %p198 = scmp.le.s32.totalorder 1, %s10
    %p199 = scmp.lt.s32.totalorder %s10, 7
    %p200 = pnand %p198, %p199
    %p201 = pneg %p200
    // Predicated region
    $region33: #{rsage_layer.1} parent=5 // pred_check
      _
    $region34: #{rsage_layer.1} parent=5 // pred_check_branch
      %203 = sbr.rel (%p200) target = $region36
    $region35: #{rsage_layer.1} parent=5 // pred_region
      %s204 = ssub.s32 %s10, 1
      %s205 = smul.u32 8, %s19
      %p206 = scmp.lt.s32.totalorder %s20, 2
      %s207 = scalar_select %p206, %s20, 2
      %p208 = scmp.lt.s32.totalorder %s205, 15
      %s209 = scalar_select %p208, %s205, 15
      %s210 = smul.addr %s209, 4
      %s211 = smul.addr %s207, 64
      %s212 = sadd.s32 %s210, %s211
      %s213 = smul.addr %s212, 8
      %s214 = scalar_lea.vmem %s0, %s213
      %p215 = pneg %p50
      %p216 = pneg %p47
      %s217 = smul.u32 32, %s19
      %p218 = scmp.lt.s32.totalorder %s20, 2
      %s219 = scalar_select %p218, %s20, 2
      %p220 = scmp.lt.s32.totalorder %s217, 63
      %s221 = scalar_select %p220, %s217, 63
      %s222 = smul.addr %s219, 64
      %s223 = sadd.s32 %s221, %s222
      %s224 = smul.addr %s223, 8
      %s225 = scalar_lea.vmem %s1, %s224
      %p226 = pneg %p78
      %p227 = pneg %p75
      %p228 = pneg %p99
      %p229 = pneg %p96
      %p230 = pneg %p120
      %p231 = pneg %p117
      %p232 = pneg %p146
      %p233 = pneg %p143
      %s234 = smul.u32 32, %s19
      %p235 = scmp.lt.s32.totalorder %s234, 63
      %s236 = scalar_select %p235, %s234, 63
      %s237 = smul.addr %s236, 8
      %s238 = scalar_lea.vmem %s4, %s237
      %s239 = smul.u32 8, %s19
      %p240 = scmp.lt.s32.totalorder %s20, 2
      %s241 = scalar_select %p240, %s20, 2
      %p242 = scmp.lt.s32.totalorder %s239, 15
      %s243 = scalar_select %p242, %s239, 15
      %s244 = smul.addr %s243, 4
      %s245 = smul.addr %s241, 64
      %s246 = sadd.s32 %s244, %s245
      %s247 = smul.addr %s246, 8
      %s248 = scalar_lea.vmem %s0, %s247
      %s249 = smul.u32 8, %s19
      %s250 = smul.u32 32, %s19
      %p251 = scmp.lt.s32.totalorder %s20, 2
      %s252 = scalar_select %p251, %s20, 2
      %p253 = scmp.lt.s32.totalorder %s250, 63
      %s254 = scalar_select %p253, %s250, 63
      %s255 = smul.addr %s252, 64
      %s256 = sadd.s32 %s254, %s255
      %s257 = smul.addr %s256, 8
      %s258 = scalar_lea.vmem %s1, %s257
      %s259 = smul.u32 32, %s19
      %s260 = smul.u32 32, %s19
      %p261 = scmp.lt.s32.totalorder %s260, 63
      %s262 = scalar_select %p261, %s260, 63
      %s263 = smul.addr %s262, 8
      %s264 = scalar_lea.vmem %s4, %s263
      %s265 = smul.u32 32, %s19
      %v267 = vld [vmem:[%s248] sm:$0xff]
      %v268 = vld [vmem:[%s248 + $0x8] sm:$0xff]
      %v269 = vld [vmem:[%s248 + $0x10] sm:$0xff]
      %v270 = vld [vmem:[%s248 + $0x18] sm:$0xff]
      %v271 = vld [vmem:[%s248 + $0x20] sm:$0xff]
      %v272 = vld [vmem:[%s248 + $0x28] sm:$0xff]
      %v273 = vld [vmem:[%s248 + $0x30] sm:$0xff]
      %v274 = vld [vmem:[%s248 + $0x38] sm:$0xff]
      %v275 = vld [vmem:[%s248 + $0x40] sm:$0xff]
      %v276 = vld [vmem:[%s248 + $0x48] sm:$0xff]
      %v277 = vld [vmem:[%s248 + $0x50] sm:$0xff]
      %v278 = vld [vmem:[%s248 + $0x58] sm:$0xff]
      %v279 = vld [vmem:[%s248 + $0x60] sm:$0xff]
      %v280 = vld [vmem:[%s248 + $0x68] sm:$0xff]
      %v281 = vld [vmem:[%s248 + $0x70] sm:$0xff]
      %v282 = vld [vmem:[%s248 + $0x78] sm:$0xff]
      %v283 = vld [vmem:[%s248 + $0x80] sm:$0xff]
      %v284 = vld [vmem:[%s248 + $0x88] sm:$0xff]
      %v285 = vld [vmem:[%s248 + $0x90] sm:$0xff]
      %v286 = vld [vmem:[%s248 + $0x98] sm:$0xff]
      %v287 = vld [vmem:[%s248 + $0xa0] sm:$0xff]
      %v288 = vld [vmem:[%s248 + $0xa8] sm:$0xff]
      %v289 = vld [vmem:[%s248 + $0xb0] sm:$0xff]
      %v290 = vld [vmem:[%s248 + $0xb8] sm:$0xff]
      %v291 = vld [vmem:[%s248 + $0xc0] sm:$0xff]
      %v292 = vld [vmem:[%s248 + $0xc8] sm:$0xff]
      %v293 = vld [vmem:[%s248 + $0xd0] sm:$0xff]
      %v294 = vld [vmem:[%s248 + $0xd8] sm:$0xff]
      %v295 = vld [vmem:[%s248 + $0xe0] sm:$0xff]
      %v296 = vld [vmem:[%s248 + $0xe8] sm:$0xff]
      %v297 = vld [vmem:[%s248 + $0xf0] sm:$0xff]
      %v298 = vld [vmem:[%s248 + $0xf8] sm:$0xff]
      %v299 = vunpack.c.l.s8.bf16 %v267
      %v300 = vunpack.c.l.s8.bf16 %v268
      %v301 = vunpack.c.l.s8.bf16 %v269
      %v302 = vunpack.c.l.s8.bf16 %v270
      %v303 = vunpack.c.h.s8.bf16 %v267
      %v304 = vunpack.c.h.s8.bf16 %v268
      %v305 = vunpack.c.h.s8.bf16 %v269
      %v306 = vunpack.c.h.s8.bf16 %v270
      %v307 = vunpack.c.l.s8.bf16 %v271
      %v308 = vunpack.c.l.s8.bf16 %v272
      %v309 = vunpack.c.l.s8.bf16 %v273
      %v310 = vunpack.c.l.s8.bf16 %v274
      %v311 = vunpack.c.h.s8.bf16 %v271
      %v312 = vunpack.c.h.s8.bf16 %v272
      %v313 = vunpack.c.h.s8.bf16 %v273
      %v314 = vunpack.c.h.s8.bf16 %v274
      %v315 = vunpack.c.l.s8.bf16 %v275
      %v316 = vunpack.c.l.s8.bf16 %v276
      %v317 = vunpack.c.l.s8.bf16 %v277
      %v318 = vunpack.c.l.s8.bf16 %v278
      %v319 = vunpack.c.h.s8.bf16 %v275
      %v320 = vunpack.c.h.s8.bf16 %v276
      %v321 = vunpack.c.h.s8.bf16 %v277
      %v322 = vunpack.c.h.s8.bf16 %v278
      %v323 = vunpack.c.l.s8.bf16 %v279
      %v324 = vunpack.c.l.s8.bf16 %v280
      %v325 = vunpack.c.l.s8.bf16 %v281
      %v326 = vunpack.c.l.s8.bf16 %v282
      %v327 = vunpack.c.h.s8.bf16 %v279
      %v328 = vunpack.c.h.s8.bf16 %v280
      %v329 = vunpack.c.h.s8.bf16 %v281
      %v330 = vunpack.c.h.s8.bf16 %v282
      %v331 = vunpack.c.l.s8.bf16 %v283
      %v332 = vunpack.c.l.s8.bf16 %v284
      %v333 = vunpack.c.l.s8.bf16 %v285
      %v334 = vunpack.c.l.s8.bf16 %v286
      %v335 = vunpack.c.h.s8.bf16 %v283
      %v336 = vunpack.c.h.s8.bf16 %v284
      %v337 = vunpack.c.h.s8.bf16 %v285
      %v338 = vunpack.c.h.s8.bf16 %v286
      %v339 = vunpack.c.l.s8.bf16 %v287
      %v340 = vunpack.c.l.s8.bf16 %v288
      %v341 = vunpack.c.l.s8.bf16 %v289
      %v342 = vunpack.c.l.s8.bf16 %v290
      %v343 = vunpack.c.h.s8.bf16 %v287
      %v344 = vunpack.c.h.s8.bf16 %v288
      %v345 = vunpack.c.h.s8.bf16 %v289
      %v346 = vunpack.c.h.s8.bf16 %v290
      %v347 = vunpack.c.l.s8.bf16 %v291
      %v348 = vunpack.c.l.s8.bf16 %v292
      %v349 = vunpack.c.l.s8.bf16 %v293
      %v350 = vunpack.c.l.s8.bf16 %v294
      %v351 = vunpack.c.h.s8.bf16 %v291
      %v352 = vunpack.c.h.s8.bf16 %v292
      %v353 = vunpack.c.h.s8.bf16 %v293
      %v354 = vunpack.c.h.s8.bf16 %v294
      %v355 = vunpack.c.l.s8.bf16 %v295
      %v356 = vunpack.c.l.s8.bf16 %v296
      %v357 = vunpack.c.l.s8.bf16 %v297
      %v358 = vunpack.c.l.s8.bf16 %v298
      %v359 = vunpack.c.h.s8.bf16 %v295
      %v360 = vunpack.c.h.s8.bf16 %v296
      %v361 = vunpack.c.h.s8.bf16 %v297
      %v362 = vunpack.c.h.s8.bf16 %v298
      %s363 = smul.u32 %s20, 64
      %s364 = smul.addr %s363, 4
      %s365 = scalar_lea.vmem %s2, %s364
      %v366 = vld [vmem:[%s365] sm:$0xf]
      %v367 = vld [vmem:[%s365 + $0x4] sm:$0xf]
      %v368 = vld [vmem:[%s365 + $0x8] sm:$0xf]
      %v369 = vld [vmem:[%s365 + $0xc] sm:$0xf]
      %v370 = vld [vmem:[%s365 + $0x10] sm:$0xf]
      %v371 = vld [vmem:[%s365 + $0x14] sm:$0xf]
      %v372 = vld [vmem:[%s365 + $0x18] sm:$0xf]
      %v373 = vld [vmem:[%s365 + $0x1c] sm:$0xf]
      %v374 = vld [vmem:[%s365 + $0x20] sm:$0xf]
      %v375 = vld [vmem:[%s365 + $0x24] sm:$0xf]
      %v376 = vld [vmem:[%s365 + $0x28] sm:$0xf]
      %v377 = vld [vmem:[%s365 + $0x2c] sm:$0xf]
      %v378 = vld [vmem:[%s365 + $0x30] sm:$0xf]
      %v379 = vld [vmem:[%s365 + $0x34] sm:$0xf]
      %v380 = vld [vmem:[%s365 + $0x38] sm:$0xf]
      %v381 = vld [vmem:[%s365 + $0x3c] sm:$0xf]
      %v382 = vld [vmem:[%s365 + $0x40] sm:$0xf]
      %v383 = vld [vmem:[%s365 + $0x44] sm:$0xf]
      %v384 = vld [vmem:[%s365 + $0x48] sm:$0xf]
      %v385 = vld [vmem:[%s365 + $0x4c] sm:$0xf]
      %v386 = vld [vmem:[%s365 + $0x50] sm:$0xf]
      %v387 = vld [vmem:[%s365 + $0x54] sm:$0xf]
      %v388 = vld [vmem:[%s365 + $0x58] sm:$0xf]
      %v389 = vld [vmem:[%s365 + $0x5c] sm:$0xf]
      %v390 = vld [vmem:[%s365 + $0x60] sm:$0xf]
      %v391 = vld [vmem:[%s365 + $0x64] sm:$0xf]
      %v392 = vld [vmem:[%s365 + $0x68] sm:$0xf]
      %v393 = vld [vmem:[%s365 + $0x6c] sm:$0xf]
      %v394 = vld [vmem:[%s365 + $0x70] sm:$0xf]
      %v395 = vld [vmem:[%s365 + $0x74] sm:$0xf]
      %v396 = vld [vmem:[%s365 + $0x78] sm:$0xf]
      %v397 = vld [vmem:[%s365 + $0x7c] sm:$0xf]
      %v398 = vld [vmem:[%s365 + $0x80] sm:$0xf]
      %v399 = vld [vmem:[%s365 + $0x84] sm:$0xf]
      %v400 = vld [vmem:[%s365 + $0x88] sm:$0xf]
      %v401 = vld [vmem:[%s365 + $0x8c] sm:$0xf]
      %v402 = vld [vmem:[%s365 + $0x90] sm:$0xf]
      %v403 = vld [vmem:[%s365 + $0x94] sm:$0xf]
      %v404 = vld [vmem:[%s365 + $0x98] sm:$0xf]
      %v405 = vld [vmem:[%s365 + $0x9c] sm:$0xf]
      %v406 = vld [vmem:[%s365 + $0xa0] sm:$0xf]
      %v407 = vld [vmem:[%s365 + $0xa4] sm:$0xf]
      %v408 = vld [vmem:[%s365 + $0xa8] sm:$0xf]
      %v409 = vld [vmem:[%s365 + $0xac] sm:$0xf]
      %v410 = vld [vmem:[%s365 + $0xb0] sm:$0xf]
      %v411 = vld [vmem:[%s365 + $0xb4] sm:$0xf]
      %v412 = vld [vmem:[%s365 + $0xb8] sm:$0xf]
      %v413 = vld [vmem:[%s365 + $0xbc] sm:$0xf]
      %v414 = vld [vmem:[%s365 + $0xc0] sm:$0xf]
      %v415 = vld [vmem:[%s365 + $0xc4] sm:$0xf]
      %v416 = vld [vmem:[%s365 + $0xc8] sm:$0xf]
      %v417 = vld [vmem:[%s365 + $0xcc] sm:$0xf]
      %v418 = vld [vmem:[%s365 + $0xd0] sm:$0xf]
      %v419 = vld [vmem:[%s365 + $0xd4] sm:$0xf]
      %v420 = vld [vmem:[%s365 + $0xd8] sm:$0xf]
      %v421 = vld [vmem:[%s365 + $0xdc] sm:$0xf]
      %v422 = vld [vmem:[%s365 + $0xe0] sm:$0xf]
      %v423 = vld [vmem:[%s365 + $0xe4] sm:$0xf]
      %v424 = vld [vmem:[%s365 + $0xe8] sm:$0xf]
      %v425 = vld [vmem:[%s365 + $0xec] sm:$0xf]
      %v426 = vld [vmem:[%s365 + $0xf0] sm:$0xf]
      %v427 = vld [vmem:[%s365 + $0xf4] sm:$0xf]
      %v428 = vld [vmem:[%s365 + $0xf8] sm:$0xf]
      %v429 = vld [vmem:[%s365 + $0xfc] sm:$0xf]
      %v494 = vunpack.c.l.b16 %v366
      %v495 = vunpack.c.l.b16 %v367
      %v496 = vunpack.c.l.b16 %v368
      %v497 = vunpack.c.l.b16 %v369
      %v498 = vunpack.c.l.b16 %v370
      %v499 = vunpack.c.l.b16 %v371
      %v500 = vunpack.c.l.b16 %v372
      %v501 = vunpack.c.l.b16 %v373
      %v502 = vunpack.c.l.b16 %v374
      %v503 = vunpack.c.l.b16 %v375
      %v504 = vunpack.c.l.b16 %v376
      %v505 = vunpack.c.l.b16 %v377
      %v506 = vunpack.c.l.b16 %v378
      %v507 = vunpack.c.l.b16 %v379
      %v508 = vunpack.c.l.b16 %v380
      %v509 = vunpack.c.l.b16 %v381
      %v510 = vunpack.c.l.b16 %v382
      %v511 = vunpack.c.l.b16 %v383
      %v512 = vunpack.c.l.b16 %v384
      %v513 = vunpack.c.l.b16 %v385
      %v514 = vunpack.c.l.b16 %v386
      %v515 = vunpack.c.l.b16 %v387
      %v516 = vunpack.c.l.b16 %v388
      %v517 = vunpack.c.l.b16 %v389
      %v518 = vunpack.c.l.b16 %v390
      %v519 = vunpack.c.l.b16 %v391
      %v520 = vunpack.c.l.b16 %v392
      %v521 = vunpack.c.l.b16 %v393
      %v522 = vunpack.c.l.b16 %v394
      %v523 = vunpack.c.l.b16 %v395
      %v524 = vunpack.c.l.b16 %v396
      %v525 = vunpack.c.l.b16 %v397
      %v526 = vunpack.c.l.b16 %v398
      %v527 = vunpack.c.l.b16 %v399
      %v528 = vunpack.c.l.b16 %v400
      %v529 = vunpack.c.l.b16 %v401
      %v530 = vunpack.c.l.b16 %v402
      %v531 = vunpack.c.l.b16 %v403
      %v532 = vunpack.c.l.b16 %v404
      %v533 = vunpack.c.l.b16 %v405
      %v534 = vunpack.c.l.b16 %v406
      %v535 = vunpack.c.l.b16 %v407
      %v536 = vunpack.c.l.b16 %v408
      %v537 = vunpack.c.l.b16 %v409
      %v538 = vunpack.c.l.b16 %v410
      %v539 = vunpack.c.l.b16 %v411
      %v540 = vunpack.c.l.b16 %v412
      %v541 = vunpack.c.l.b16 %v413
      %v542 = vunpack.c.l.b16 %v414
      %v543 = vunpack.c.l.b16 %v415
      %v544 = vunpack.c.l.b16 %v416
      %v545 = vunpack.c.l.b16 %v417
      %v546 = vunpack.c.l.b16 %v418
      %v547 = vunpack.c.l.b16 %v419
      %v548 = vunpack.c.l.b16 %v420
      %v549 = vunpack.c.l.b16 %v421
      %v550 = vunpack.c.l.b16 %v422
      %v551 = vunpack.c.l.b16 %v423
      %v552 = vunpack.c.l.b16 %v424
      %v553 = vunpack.c.l.b16 %v425
      %v554 = vunpack.c.l.b16 %v426
      %v555 = vunpack.c.l.b16 %v427
      %v556 = vunpack.c.l.b16 %v428
      %v557 = vunpack.c.l.b16 %v429
      %v558 = vpack.c.b16 %v495, %v494
      %v559 = vpack.c.b16 %v497, %v496
      %v560 = vpack.c.b16 %v499, %v498
      %v561 = vpack.c.b16 %v501, %v500
      %v562 = vpack.c.b16 %v503, %v502
      %v563 = vpack.c.b16 %v505, %v504
      %v564 = vpack.c.b16 %v507, %v506
      %v565 = vpack.c.b16 %v509, %v508
      %v566 = vpack.c.b16 %v511, %v510
      %v567 = vpack.c.b16 %v513, %v512
      %v568 = vpack.c.b16 %v515, %v514
      %v569 = vpack.c.b16 %v517, %v516
      %v570 = vpack.c.b16 %v519, %v518
      %v571 = vpack.c.b16 %v521, %v520
      %v572 = vpack.c.b16 %v523, %v522
      %v573 = vpack.c.b16 %v525, %v524
      %v574 = vpack.c.b16 %v527, %v526
      %v575 = vpack.c.b16 %v529, %v528
      %v576 = vpack.c.b16 %v531, %v530
      %v577 = vpack.c.b16 %v533, %v532
      %v578 = vpack.c.b16 %v535, %v534
      %v579 = vpack.c.b16 %v537, %v536
      %v580 = vpack.c.b16 %v539, %v538
      %v581 = vpack.c.b16 %v541, %v540
      %v582 = vpack.c.b16 %v543, %v542
      %v583 = vpack.c.b16 %v545, %v544
      %v584 = vpack.c.b16 %v547, %v546
      %v585 = vpack.c.b16 %v549, %v548
      %v586 = vpack.c.b16 %v551, %v550
      %v587 = vpack.c.b16 %v553, %v552
      %v588 = vpack.c.b16 %v555, %v554
      %v589 = vpack.c.b16 %v557, %v556
      %622 = vmatprep.subr.bf16.mxu0 0
      %623 = vmatpush1.bf16.msra.mxu0 %v558
      %624 = vmatprep.subr.bf16.mxu0 0
      %625 = vmatpush1.bf16.msra.mxu0 %v559
      %626 = vmatprep.subr.bf16.mxu0 0
      %627 = vmatpush1.bf16.msra.mxu0 %v560
      %628 = vmatprep.subr.bf16.mxu0 0
      %629 = vmatpush1.bf16.msra.mxu0 %v561
      %630 = vmatprep.subr.bf16.mxu0 0
      %631 = vmatpush1.bf16.msra.mxu0 %v562
      %632 = vmatprep.subr.bf16.mxu0 0
      %633 = vmatpush1.bf16.msra.mxu0 %v563
      %634 = vmatprep.subr.bf16.mxu0 0
      %635 = vmatpush1.bf16.msra.mxu0 %v564
      %636 = vmatprep.subr.bf16.mxu0 0
      %637 = vmatpush1.bf16.msra.mxu0 %v565
      %638 = vmatprep.subr.bf16.mxu0 0
      %639 = vmatpush1.bf16.msra.mxu0 %v566
      %640 = vmatprep.subr.bf16.mxu0 0
      %641 = vmatpush1.bf16.msra.mxu0 %v567
      %642 = vmatprep.subr.bf16.mxu0 0
      %643 = vmatpush1.bf16.msra.mxu0 %v568
      %644 = vmatprep.subr.bf16.mxu0 0
      %645 = vmatpush1.bf16.msra.mxu0 %v569
      %646 = vmatprep.subr.bf16.mxu0 0
      %647 = vmatpush1.bf16.msra.mxu0 %v570
      %648 = vmatprep.subr.bf16.mxu0 0
      %649 = vmatpush1.bf16.msra.mxu0 %v571
      %650 = vmatprep.subr.bf16.mxu0 0
      %651 = vmatpush1.bf16.msra.mxu0 %v572
      %652 = vmatprep.subr.bf16.mxu0 0
      %653 = vmatpush1.bf16.msra.mxu0 %v573
      %654 = vmatprep.mubr.bf16.mxu0 %v300
      %655 = vmatmul.mubr.bf16.gmra.mrb[0].mxu0 %v299
      %v656 = vpop.f32.mrb[0].mxu0
      %v657 = vadd.f32 0.0, %v656
      %v658 = vpop.f32.mrb[0].mxu0
      %v659 = vpop.f32.mrb[0].mxu0
      %v660 = vadd.f32 0.0, %v659
      %v661 = vpop.f32.mrb[0].mxu0
      %662 = vmatprep.mubr.bf16.mxu0 %v304
      %663 = vmatmul.mubr.bf16.gmra.mrb[0].mxu0 %v303
      %v664 = vpop.f32.mrb[0].mxu0
      %v665 = vadd.f32 0.0, %v664
      %v666 = vpop.f32.mrb[0].mxu0
      %v667 = vpop.f32.mrb[0].mxu0
      %v668 = vadd.f32 0.0, %v667
      %v669 = vpop.f32.mrb[0].mxu0
      %670 = vmatprep.mubr.bf16.mxu0 %v308
      %671 = vmatmul.mubr.bf16.gmra.mrb[0].mxu0 %v307
      %v672 = vpop.f32.mrb[0].mxu0
      %v673 = vadd.f32 0.0, %v672
      %v674 = vpop.f32.mrb[0].mxu0
      %v675 = vpop.f32.mrb[0].mxu0
      %v676 = vadd.f32 0.0, %v675
      %v677 = vpop.f32.mrb[0].mxu0
      %678 = vmatprep.mubr.bf16.mxu0 %v312
      %679 = vmatmul.mubr.bf16.gmra.mrb[0].mxu0 %v311
      %v680 = vpop.f32.mrb[0].mxu0
      %v681 = vadd.f32 0.0, %v680
      %v682 = vpop.f32.mrb[0].mxu0
      %v683 = vpop.f32.mrb[0].mxu0
      %v684 = vadd.f32 0.0, %v683
      %v685 = vpop.f32.mrb[0].mxu0
      %686 = vmatprep.mubr.bf16.mxu0 %v316
      %687 = vmatmul.mubr.bf16.gmra.mrb[0].mxu0 %v315
      %v688 = vpop.f32.mrb[0].mxu0
      %v689 = vadd.f32 0.0, %v688
      %v690 = vpop.f32.mrb[0].mxu0
      %v691 = vpop.f32.mrb[0].mxu0
      %v692 = vadd.f32 0.0, %v691
      %v693 = vpop.f32.mrb[0].mxu0
      %694 = vmatprep.mubr.bf16.mxu0 %v320
      %695 = vmatmul.mubr.bf16.gmra.mrb[0].mxu0 %v319
      %v696 = vpop.f32.mrb[0].mxu0
      %v697 = vadd.f32 0.0, %v696
      %v698 = vpop.f32.mrb[0].mxu0
      %v699 = vpop.f32.mrb[0].mxu0
      %v700 = vadd.f32 0.0, %v699
      %v701 = vpop.f32.mrb[0].mxu0
      %702 = vmatprep.mubr.bf16.mxu0 %v324
      %703 = vmatmul.mubr.bf16.gmra.mrb[0].mxu0 %v323
      %v704 = vpop.f32.mrb[0].mxu0
      %v705 = vadd.f32 0.0, %v704
      %v706 = vpop.f32.mrb[0].mxu0
      %v707 = vpop.f32.mrb[0].mxu0
      %v708 = vadd.f32 0.0, %v707
      %v709 = vpop.f32.mrb[0].mxu0
      %710 = vmatprep.mubr.bf16.mxu0 %v328
      %711 = vmatmul.mubr.bf16.gmra.mrb[0].mxu0 %v327
      %v712 = vpop.f32.mrb[0].mxu0
      %v713 = vadd.f32 0.0, %v712
      %v714 = vpop.f32.mrb[0].mxu0
      %v715 = vpop.f32.mrb[0].mxu0
      %v716 = vadd.f32 0.0, %v715
      %v717 = vpop.f32.mrb[0].mxu0
      %718 = vmatprep.mubr.bf16.mxu0 %v332
      %719 = vmatmul.mubr.bf16.gmra.mrb[0].mxu0 %v331
      %v720 = vpop.f32.mrb[0].mxu0
      %v721 = vadd.f32 0.0, %v720
      %v722 = vpop.f32.mrb[0].mxu0
      %v723 = vpop.f32.mrb[0].mxu0
      %v724 = vadd.f32 0.0, %v723
      %v725 = vpop.f32.mrb[0].mxu0
      %726 = vmatprep.mubr.bf16.mxu0 %v336
      %727 = vmatmul.mubr.bf16.gmra.mrb[0].mxu0 %v335
      %v728 = vpop.f32.mrb[0].mxu0
      %v729 = vadd.f32 0.0, %v728
      %v730 = vpop.f32.mrb[0].mxu0
      %v731 = vpop.f32.mrb[0].mxu0
      %v732 = vadd.f32 0.0, %v731
      %v733 = vpop.f32.mrb[0].mxu0
      %734 = vmatprep.mubr.bf16.mxu0 %v340
      %735 = vmatmul.mubr.bf16.gmra.mrb[0].mxu0 %v339
      %v736 = vpop.f32.mrb[0].mxu0
      %v737 = vadd.f32 0.0, %v736
      %v738 = vpop.f32.mrb[0].mxu0
      %v739 = vpop.f32.mrb[0].mxu0
      %v740 = vadd.f32 0.0, %v739
      %v741 = vpop.f32.mrb[0].mxu0
      %742 = vmatprep.mubr.bf16.mxu0 %v344
      %743 = vmatmul.mubr.bf16.gmra.mrb[0].mxu0 %v343
      %v744 = vpop.f32.mrb[0].mxu0
      %v745 = vadd.f32 0.0, %v744
      %v746 = vpop.f32.mrb[0].mxu0
      %v747 = vpop.f32.mrb[0].mxu0
      %v748 = vadd.f32 0.0, %v747
      %v749 = vpop.f32.mrb[0].mxu0
      %750 = vmatprep.mubr.bf16.mxu0 %v348
      %751 = vmatmul.mubr.bf16.gmra.mrb[0].mxu0 %v347
      %v752 = vpop.f32.mrb[0].mxu0
      %v753 = vadd.f32 0.0, %v752
      %v754 = vpop.f32.mrb[0].mxu0
      %v755 = vpop.f32.mrb[0].mxu0
      %v756 = vadd.f32 0.0, %v755
      %v757 = vpop.f32.mrb[0].mxu0
      %758 = vmatprep.mubr.bf16.mxu0 %v352
      %759 = vmatmul.mubr.bf16.gmra.mrb[0].mxu0 %v351
      %v760 = vpop.f32.mrb[0].mxu0
      %v761 = vadd.f32 0.0, %v760
      %v762 = vpop.f32.mrb[0].mxu0
      %v763 = vpop.f32.mrb[0].mxu0
      %v764 = vadd.f32 0.0, %v763
      %v765 = vpop.f32.mrb[0].mxu0
      %766 = vmatprep.mubr.bf16.mxu0 %v356
      %767 = vmatmul.mubr.bf16.gmra.mrb[0].mxu0 %v355
      %v768 = vpop.f32.mrb[0].mxu0
      %v769 = vadd.f32 0.0, %v768
      %v770 = vpop.f32.mrb[0].mxu0
      %v771 = vpop.f32.mrb[0].mxu0
      %v772 = vadd.f32 0.0, %v771
      %v773 = vpop.f32.mrb[0].mxu0
      %774 = vmatprep.mubr.bf16.mxu0 %v360
      %775 = vmatmul.mubr.bf16.gmra.mrb[0].mxu0 %v359
      %v776 = vpop.f32.mrb[0].mxu0
      %v777 = vadd.f32 0.0, %v776
      %v778 = vpop.f32.mrb[0].mxu0
      %v779 = vpop.f32.mrb[0].mxu0
      %v780 = vadd.f32 0.0, %v779
      %v781 = vpop.f32.mrb[0].mxu0
      %782 = vdwg.mxu0
      %783 = vmatprep.subr.bf16.mxu0 0
      %784 = vmatpush1.bf16.msra.mxu0 %v574
      %785 = vmatprep.subr.bf16.mxu0 0
      %786 = vmatpush1.bf16.msra.mxu0 %v575
      %787 = vmatprep.subr.bf16.mxu0 0
      %788 = vmatpush1.bf16.msra.mxu0 %v576
      %789 = vmatprep.subr.bf16.mxu0 0
      %790 = vmatpush1.bf16.msra.mxu0 %v577
      %791 = vmatprep.subr.bf16.mxu0 0
      %792 = vmatpush1.bf16.msra.mxu0 %v578
      %793 = vmatprep.subr.bf16.mxu0 0
      %794 = vmatpush1.bf16.msra.mxu0 %v579
      %795 = vmatprep.subr.bf16.mxu0 0
      %796 = vmatpush1.bf16.msra.mxu0 %v580
      %797 = vmatprep.subr.bf16.mxu0 0
      %798 = vmatpush1.bf16.msra.mxu0 %v581
      %799 = vmatprep.subr.bf16.mxu0 0
      %800 = vmatpush1.bf16.msra.mxu0 %v582
      %801 = vmatprep.subr.bf16.mxu0 0
      %802 = vmatpush1.bf16.msra.mxu0 %v583
      %803 = vmatprep.subr.bf16.mxu0 0
      %804 = vmatpush1.bf16.msra.mxu0 %v584
      %805 = vmatprep.subr.bf16.mxu0 0
      %806 = vmatpush1.bf16.msra.mxu0 %v585
      %807 = vmatprep.subr.bf16.mxu0 0
      %808 = vmatpush1.bf16.msra.mxu0 %v586
      %809 = vmatprep.subr.bf16.mxu0 0
      %810 = vmatpush1.bf16.msra.mxu0 %v587
      %811 = vmatprep.subr.bf16.mxu0 0
      %812 = vmatpush1.bf16.msra.mxu0 %v588
      %813 = vmatprep.subr.bf16.mxu0 0
      %814 = vmatpush1.bf16.msra.mxu0 %v589
      %815 = vmatprep.mubr.bf16.mxu0 %v302
      %816 = vmatmul.mubr.bf16.gmra.mrb[0].mxu0 %v301
      %v817 = vpop.f32.mrb[0].mxu0
      %v818 = vadd.f32 %v657, %v817
      %v819 = vpop.f32.mrb[0].mxu0
      %v820 = vpop.f32.mrb[0].mxu0
      %v821 = vadd.f32 %v660, %v820
      %v822 = vpop.f32.mrb[0].mxu0
      %823 = vmatprep.mubr.bf16.mxu0 %v306
      %824 = vmatmul.mubr.bf16.gmra.mrb[0].mxu0 %v305
      %v825 = vpop.f32.mrb[0].mxu0
      %v826 = vadd.f32 %v665, %v825
      %v827 = vpop.f32.mrb[0].mxu0
      %v828 = vpop.f32.mrb[0].mxu0
      %v829 = vadd.f32 %v668, %v828
      %v830 = vpop.f32.mrb[0].mxu0
      %831 = vmatprep.mubr.bf16.mxu0 %v310
      %832 = vmatmul.mubr.bf16.gmra.mrb[0].mxu0 %v309
      %v833 = vpop.f32.mrb[0].mxu0
      %v834 = vadd.f32 %v673, %v833
      %v835 = vpop.f32.mrb[0].mxu0
      %v836 = vpop.f32.mrb[0].mxu0
      %v837 = vadd.f32 %v676, %v836
      %v838 = vpop.f32.mrb[0].mxu0
      %839 = vmatprep.mubr.bf16.mxu0 %v314
      %840 = vmatmul.mubr.bf16.gmra.mrb[0].mxu0 %v313
      %v841 = vpop.f32.mrb[0].mxu0
      %v842 = vadd.f32 %v681, %v841
      %v843 = vpop.f32.mrb[0].mxu0
      %v844 = vpop.f32.mrb[0].mxu0
      %v845 = vadd.f32 %v684, %v844
      %v846 = vpop.f32.mrb[0].mxu0
      %847 = vmatprep.mubr.bf16.mxu0 %v318
      %848 = vmatmul.mubr.bf16.gmra.mrb[0].mxu0 %v317
      %v849 = vpop.f32.mrb[0].mxu0
      %v850 = vadd.f32 %v689, %v849
      %v851 = vpop.f32.mrb[0].mxu0
      %v852 = vpop.f32.mrb[0].mxu0
      %v853 = vadd.f32 %v692, %v852
      %v854 = vpop.f32.mrb[0].mxu0
      %855 = vmatprep.mubr.bf16.mxu0 %v322
      %856 = vmatmul.mubr.bf16.gmra.mrb[0].mxu0 %v321
      %v857 = vpop.f32.mrb[0].mxu0
      %v858 = vadd.f32 %v697, %v857
      %v859 = vpop.f32.mrb[0].mxu0
      %v860 = vpop.f32.mrb[0].mxu0
      %v861 = vadd.f32 %v700, %v860
      %v862 = vpop.f32.mrb[0].mxu0
      %863 = vmatprep.mubr.bf16.mxu0 %v326
      %864 = vmatmul.mubr.bf16.gmra.mrb[0].mxu0 %v325
      %v865 = vpop.f32.mrb[0].mxu0
      %v866 = vadd.f32 %v705, %v865
      %v867 = vpop.f32.mrb[0].mxu0
      %v868 = vpop.f32.mrb[0].mxu0
      %v869 = vadd.f32 %v708, %v868
      %v870 = vpop.f32.mrb[0].mxu0
      %871 = vmatprep.mubr.bf16.mxu0 %v330
      %872 = vmatmul.mubr.bf16.gmra.mrb[0].mxu0 %v329
      %v873 = vpop.f32.mrb[0].mxu0
      %v874 = vadd.f32 %v713, %v873
      %v875 = vpop.f32.mrb[0].mxu0
      %v876 = vpop.f32.mrb[0].mxu0
      %v877 = vadd.f32 %v716, %v876
      %v878 = vpop.f32.mrb[0].mxu0
      %879 = vmatprep.mubr.bf16.mxu0 %v334
      %880 = vmatmul.mubr.bf16.gmra.mrb[0].mxu0 %v333
      %v881 = vpop.f32.mrb[0].mxu0
      %v882 = vadd.f32 %v721, %v881
      %v883 = vpop.f32.mrb[0].mxu0
      %v884 = vpop.f32.mrb[0].mxu0
      %v885 = vadd.f32 %v724, %v884
      %v886 = vpop.f32.mrb[0].mxu0
      %887 = vmatprep.mubr.bf16.mxu0 %v338
      %888 = vmatmul.mubr.bf16.gmra.mrb[0].mxu0 %v337
      %v889 = vpop.f32.mrb[0].mxu0
      %v890 = vadd.f32 %v729, %v889
      %v891 = vpop.f32.mrb[0].mxu0
      %v892 = vpop.f32.mrb[0].mxu0
      %v893 = vadd.f32 %v732, %v892
      %v894 = vpop.f32.mrb[0].mxu0
      %895 = vmatprep.mubr.bf16.mxu0 %v342
      %896 = vmatmul.mubr.bf16.gmra.mrb[0].mxu0 %v341
      %v897 = vpop.f32.mrb[0].mxu0
      %v898 = vadd.f32 %v737, %v897
      %v899 = vpop.f32.mrb[0].mxu0
      %v900 = vpop.f32.mrb[0].mxu0
      %v901 = vadd.f32 %v740, %v900
      %v902 = vpop.f32.mrb[0].mxu0
      %903 = vmatprep.mubr.bf16.mxu0 %v346
      %904 = vmatmul.mubr.bf16.gmra.mrb[0].mxu0 %v345
      %v905 = vpop.f32.mrb[0].mxu0
      %v906 = vadd.f32 %v745, %v905
      %v907 = vpop.f32.mrb[0].mxu0
      %v908 = vpop.f32.mrb[0].mxu0
      %v909 = vadd.f32 %v748, %v908
      %v910 = vpop.f32.mrb[0].mxu0
      %911 = vmatprep.mubr.bf16.mxu0 %v350
      %912 = vmatmul.mubr.bf16.gmra.mrb[0].mxu0 %v349
      %v913 = vpop.f32.mrb[0].mxu0
      %v914 = vadd.f32 %v753, %v913
      %v915 = vpop.f32.mrb[0].mxu0
      %v916 = vpop.f32.mrb[0].mxu0
      %v917 = vadd.f32 %v756, %v916
      %v918 = vpop.f32.mrb[0].mxu0
      %919 = vmatprep.mubr.bf16.mxu0 %v354
      %920 = vmatmul.mubr.bf16.gmra.mrb[0].mxu0 %v353
      %v921 = vpop.f32.mrb[0].mxu0
      %v922 = vadd.f32 %v761, %v921
      %v923 = vpop.f32.mrb[0].mxu0
      %v924 = vpop.f32.mrb[0].mxu0
      %v925 = vadd.f32 %v764, %v924
      %v926 = vpop.f32.mrb[0].mxu0
      %927 = vmatprep.mubr.bf16.mxu0 %v358
      %928 = vmatmul.mubr.bf16.gmra.mrb[0].mxu0 %v357
      %v929 = vpop.f32.mrb[0].mxu0
      %v930 = vadd.f32 %v769, %v929
      %v931 = vpop.f32.mrb[0].mxu0
      %v932 = vpop.f32.mrb[0].mxu0
      %v933 = vadd.f32 %v772, %v932
      %v934 = vpop.f32.mrb[0].mxu0
      %935 = vmatprep.mubr.bf16.mxu0 %v362
      %936 = vmatmul.mubr.bf16.gmra.mrb[0].mxu0 %v361
      %v937 = vpop.f32.mrb[0].mxu0
      %v938 = vadd.f32 %v777, %v937
      %v939 = vpop.f32.mrb[0].mxu0
      %v940 = vpop.f32.mrb[0].mxu0
      %v941 = vadd.f32 %v780, %v940
      %v942 = vpop.f32.mrb[0].mxu0
      %943 = vdwg.mxu0
      %v944 = vld [vmem:[%s258] sm:$0xff]
      %v945 = vld [vmem:[%s258 + $0x8] sm:$0xff]
      %v946 = vld [vmem:[%s258 + $0x10] sm:$0xff]
      %v947 = vld [vmem:[%s258 + $0x18] sm:$0xff]
      %v948 = vld [vmem:[%s258 + $0x20] sm:$0xff]
      %v949 = vld [vmem:[%s258 + $0x28] sm:$0xff]
      %v950 = vld [vmem:[%s258 + $0x30] sm:$0xff]
      %v951 = vld [vmem:[%s258 + $0x38] sm:$0xff]
      %v952 = vld [vmem:[%s258 + $0x40] sm:$0xff]
      %v953 = vld [vmem:[%s258 + $0x48] sm:$0xff]
      %v954 = vld [vmem:[%s258 + $0x50] sm:$0xff]
      %v955 = vld [vmem:[%s258 + $0x58] sm:$0xff]
      %v956 = vld [vmem:[%s258 + $0x60] sm:$0xff]
      %v957 = vld [vmem:[%s258 + $0x68] sm:$0xff]
      %v958 = vld [vmem:[%s258 + $0x70] sm:$0xff]
      %v959 = vld [vmem:[%s258 + $0x78] sm:$0xff]
      %v960 = vld [vmem:[%s258 + $0x80] sm:$0xff]
      %v961 = vld [vmem:[%s258 + $0x88] sm:$0xff]
      %v962 = vld [vmem:[%s258 + $0x90] sm:$0xff]
      %v963 = vld [vmem:[%s258 + $0x98] sm:$0xff]
      %v964 = vld [vmem:[%s258 + $0xa0] sm:$0xff]
      %v965 = vld [vmem:[%s258 + $0xa8] sm:$0xff]
      %v966 = vld [vmem:[%s258 + $0xb0] sm:$0xff]
      %v967 = vld [vmem:[%s258 + $0xb8] sm:$0xff]
      %v968 = vld [vmem:[%s258 + $0xc0] sm:$0xff]
      %v969 = vld [vmem:[%s258 + $0xc8] sm:$0xff]
      %v970 = vld [vmem:[%s258 + $0xd0] sm:$0xff]
      %v971 = vld [vmem:[%s258 + $0xd8] sm:$0xff]
      %v972 = vld [vmem:[%s258 + $0xe0] sm:$0xff]
      %v973 = vld [vmem:[%s258 + $0xe8] sm:$0xff]
      %v974 = vld [vmem:[%s258 + $0xf0] sm:$0xff]
      %v975 = vld [vmem:[%s258 + $0xf8] sm:$0xff]
      %977 = vset.pattern.permute.xlu0 0
      %978 = vperm.xlu0 %977, %v944
      %v979 = vpop.permute.xlu0 %978
      %982 = vset.pattern.permute.xlu0 0
      %983 = vperm.xlu0 %982, %v945
      %v984 = vpop.permute.xlu0 %983
      %987 = vset.pattern.permute.xlu0 0
      %988 = vperm.xlu0 %987, %v946
      %v989 = vpop.permute.xlu0 %988
      %992 = vset.pattern.permute.xlu0 0
      %993 = vperm.xlu0 %992, %v947
      %v994 = vpop.permute.xlu0 %993
      %997 = vset.pattern.permute.xlu0 0
      %998 = vperm.xlu0 %997, %v948
      %v999 = vpop.permute.xlu0 %998
      %1002 = vset.pattern.permute.xlu0 0
      %1003 = vperm.xlu0 %1002, %v949
      %v1004 = vpop.permute.xlu0 %1003
      %1007 = vset.pattern.permute.xlu0 0
      %1008 = vperm.xlu0 %1007, %v950
      %v1009 = vpop.permute.xlu0 %1008
      %1012 = vset.pattern.permute.xlu0 0
      %1013 = vperm.xlu0 %1012, %v951
      %v1014 = vpop.permute.xlu0 %1013
      %1017 = vset.pattern.permute.xlu0 0
      %1018 = vperm.xlu0 %1017, %v952
      %v1019 = vpop.permute.xlu0 %1018
      %1022 = vset.pattern.permute.xlu0 0
      %1023 = vperm.xlu0 %1022, %v953
      %v1024 = vpop.permute.xlu0 %1023
      %1027 = vset.pattern.permute.xlu0 0
      %1028 = vperm.xlu0 %1027, %v954
      %v1029 = vpop.permute.xlu0 %1028
      %1032 = vset.pattern.permute.xlu0 0
      %1033 = vperm.xlu0 %1032, %v955
      %v1034 = vpop.permute.xlu0 %1033
      %1037 = vset.pattern.permute.xlu0 0
      %1038 = vperm.xlu0 %1037, %v956
      %v1039 = vpop.permute.xlu0 %1038
      %1042 = vset.pattern.permute.xlu0 0
      %1043 = vperm.xlu0 %1042, %v957
      %v1044 = vpop.permute.xlu0 %1043
      %1047 = vset.pattern.permute.xlu0 0
      %1048 = vperm.xlu0 %1047, %v958
      %v1049 = vpop.permute.xlu0 %1048
      %1052 = vset.pattern.permute.xlu0 0
      %1053 = vperm.xlu0 %1052, %v959
      %v1054 = vpop.permute.xlu0 %1053
      %1057 = vset.pattern.permute.xlu0 0
      %1058 = vperm.xlu0 %1057, %v960
      %v1059 = vpop.permute.xlu0 %1058
      %1062 = vset.pattern.permute.xlu0 0
      %1063 = vperm.xlu0 %1062, %v961
      %v1064 = vpop.permute.xlu0 %1063
      %1067 = vset.pattern.permute.xlu0 0
      %1068 = vperm.xlu0 %1067, %v962
      %v1069 = vpop.permute.xlu0 %1068
      %1072 = vset.pattern.permute.xlu0 0
      %1073 = vperm.xlu0 %1072, %v963
      %v1074 = vpop.permute.xlu0 %1073
      %1077 = vset.pattern.permute.xlu0 0
      %1078 = vperm.xlu0 %1077, %v964
      %v1079 = vpop.permute.xlu0 %1078
      %1082 = vset.pattern.permute.xlu0 0
      %1083 = vperm.xlu0 %1082, %v965
      %v1084 = vpop.permute.xlu0 %1083
      %1087 = vset.pattern.permute.xlu0 0
      %1088 = vperm.xlu0 %1087, %v966
      %v1089 = vpop.permute.xlu0 %1088
      %1092 = vset.pattern.permute.xlu0 0
      %1093 = vperm.xlu0 %1092, %v967
      %v1094 = vpop.permute.xlu0 %1093
      %1097 = vset.pattern.permute.xlu0 0
      %1098 = vperm.xlu0 %1097, %v968
      %v1099 = vpop.permute.xlu0 %1098
      %1102 = vset.pattern.permute.xlu0 0
      %1103 = vperm.xlu0 %1102, %v969
      %v1104 = vpop.permute.xlu0 %1103
      %1107 = vset.pattern.permute.xlu0 0
      %1108 = vperm.xlu0 %1107, %v970
      %v1109 = vpop.permute.xlu0 %1108
      %1112 = vset.pattern.permute.xlu0 0
      %1113 = vperm.xlu0 %1112, %v971
      %v1114 = vpop.permute.xlu0 %1113
      %1117 = vset.pattern.permute.xlu0 0
      %1118 = vperm.xlu0 %1117, %v972
      %v1119 = vpop.permute.xlu0 %1118
      %1122 = vset.pattern.permute.xlu0 0
      %1123 = vperm.xlu0 %1122, %v973
      %v1124 = vpop.permute.xlu0 %1123
      %1127 = vset.pattern.permute.xlu0 0
      %1128 = vperm.xlu0 %1127, %v974
      %v1129 = vpop.permute.xlu0 %1128
      %1132 = vset.pattern.permute.xlu0 0
      %1133 = vperm.xlu0 %1132, %v975
      %v1134 = vpop.permute.xlu0 %1133
      %v1136 = vmul.f32 %v818, %v979
      %v1137 = vmul.f32 %v821, %v984
      %v1138 = vmul.f32 %v826, %v989
      %v1139 = vmul.f32 %v829, %v994
      %v1140 = vmul.f32 %v834, %v999
      %v1141 = vmul.f32 %v837, %v1004
      %v1142 = vmul.f32 %v842, %v1009
      %v1143 = vmul.f32 %v845, %v1014
      %v1144 = vmul.f32 %v850, %v1019
      %v1145 = vmul.f32 %v853, %v1024
      %v1146 = vmul.f32 %v858, %v1029
      %v1147 = vmul.f32 %v861, %v1034
      %v1148 = vmul.f32 %v866, %v1039
      %v1149 = vmul.f32 %v869, %v1044
      %v1150 = vmul.f32 %v874, %v1049
      %v1151 = vmul.f32 %v877, %v1054
      %v1152 = vmul.f32 %v882, %v1059
      %v1153 = vmul.f32 %v885, %v1064
      %v1154 = vmul.f32 %v890, %v1069
      %v1155 = vmul.f32 %v893, %v1074
      %v1156 = vmul.f32 %v898, %v1079
      %v1157 = vmul.f32 %v901, %v1084
      %v1158 = vmul.f32 %v906, %v1089
      %v1159 = vmul.f32 %v909, %v1094
      %v1160 = vmul.f32 %v914, %v1099
      %v1161 = vmul.f32 %v917, %v1104
      %v1162 = vmul.f32 %v922, %v1109
      %v1163 = vmul.f32 %v925, %v1114
      %v1164 = vmul.f32 %v930, %v1119
      %v1165 = vmul.f32 %v933, %v1124
      %v1166 = vmul.f32 %v938, %v1129
      %v1167 = vmul.f32 %v941, %v1134
      %s1168 = scalar_lea.vmem %s3, %s20
      %v1169 = vld [vmem:[%s1168] sm:$0x1]
      %v1171 = vlaneseq
      %v1172 = vshrl.u32 %v1171, 7
      %v1173 = vsub.s32 0, %v1172
      %v1174 = vrot.slane %v1169, %v1173
      %v1176 = vadd.f32 %v1136, %v1174
      %v1177 = vadd.f32 %v1137, %v1174
      %v1178 = vadd.f32 %v1138, %v1174
      %v1179 = vadd.f32 %v1139, %v1174
      %v1180 = vadd.f32 %v1140, %v1174
      %v1181 = vadd.f32 %v1141, %v1174
      %v1182 = vadd.f32 %v1142, %v1174
      %v1183 = vadd.f32 %v1143, %v1174
      %v1184 = vadd.f32 %v1144, %v1174
      %v1185 = vadd.f32 %v1145, %v1174
      %v1186 = vadd.f32 %v1146, %v1174
      %v1187 = vadd.f32 %v1147, %v1174
      %v1188 = vadd.f32 %v1148, %v1174
      %v1189 = vadd.f32 %v1149, %v1174
      %v1190 = vadd.f32 %v1150, %v1174
      %v1191 = vadd.f32 %v1151, %v1174
      %v1192 = vadd.f32 %v1152, %v1174
      %v1193 = vadd.f32 %v1153, %v1174
      %v1194 = vadd.f32 %v1154, %v1174
      %v1195 = vadd.f32 %v1155, %v1174
      %v1196 = vadd.f32 %v1156, %v1174
      %v1197 = vadd.f32 %v1157, %v1174
      %v1198 = vadd.f32 %v1158, %v1174
      %v1199 = vadd.f32 %v1159, %v1174
      %v1200 = vadd.f32 %v1160, %v1174
      %v1201 = vadd.f32 %v1161, %v1174
      %v1202 = vadd.f32 %v1162, %v1174
      %v1203 = vadd.f32 %v1163, %v1174
      %v1204 = vadd.f32 %v1164, %v1174
      %v1205 = vadd.f32 %v1165, %v1174
      %v1206 = vadd.f32 %v1166, %v1174
      %v1207 = vadd.f32 %v1167, %v1174
      %v1208 = vmax.f32 %v1176, 0.0
      %v1209 = vmax.f32 %v1177, 0.0
      %v1210 = vmax.f32 %v1178, 0.0
      %v1211 = vmax.f32 %v1179, 0.0
      %v1212 = vmax.f32 %v1180, 0.0
      %v1213 = vmax.f32 %v1181, 0.0
      %v1214 = vmax.f32 %v1182, 0.0
      %v1215 = vmax.f32 %v1183, 0.0
      %v1216 = vmax.f32 %v1184, 0.0
      %v1217 = vmax.f32 %v1185, 0.0
      %v1218 = vmax.f32 %v1186, 0.0
      %v1219 = vmax.f32 %v1187, 0.0
      %v1220 = vmax.f32 %v1188, 0.0
      %v1221 = vmax.f32 %v1189, 0.0
      %v1222 = vmax.f32 %v1190, 0.0
      %v1223 = vmax.f32 %v1191, 0.0
      %v1224 = vmax.f32 %v1192, 0.0
      %v1225 = vmax.f32 %v1193, 0.0
      %v1226 = vmax.f32 %v1194, 0.0
      %v1227 = vmax.f32 %v1195, 0.0
      %v1228 = vmax.f32 %v1196, 0.0
      %v1229 = vmax.f32 %v1197, 0.0
      %v1230 = vmax.f32 %v1198, 0.0
      %v1231 = vmax.f32 %v1199, 0.0
      %v1232 = vmax.f32 %v1200, 0.0
      %v1233 = vmax.f32 %v1201, 0.0
      %v1234 = vmax.f32 %v1202, 0.0
      %v1235 = vmax.f32 %v1203, 0.0
      %v1236 = vmax.f32 %v1204, 0.0
      %v1237 = vmax.f32 %v1205, 0.0
      %v1238 = vmax.f32 %v1206, 0.0
      %v1239 = vmax.f32 %v1207, 0.0
      %p1240 = scmp.eq.s32.totalorder %s20, 0
      // Predicated region
      $region37: #{rsage_layer.1} parent=35 // pred_check
        %p1241 = pneg %p1240
      $region38: #{rsage_layer.1} parent=35 // pred_check_branch
        %1243 = sbr.rel (%p1241) target = $region40
      $region39: #{rsage_layer.1} parent=35 // pred_region
        %1244 = vst [vmem:[%s264] sm:$0xff] %v1208
        %1245 = vst [vmem:[%s264 + $0x8] sm:$0xff] %v1209
        %1246 = vst [vmem:[%s264 + $0x10] sm:$0xff] %v1210
        %1247 = vst [vmem:[%s264 + $0x18] sm:$0xff] %v1211
        %1248 = vst [vmem:[%s264 + $0x20] sm:$0xff] %v1212
        %1249 = vst [vmem:[%s264 + $0x28] sm:$0xff] %v1213
        %1250 = vst [vmem:[%s264 + $0x30] sm:$0xff] %v1214
        %1251 = vst [vmem:[%s264 + $0x38] sm:$0xff] %v1215
        %1252 = vst [vmem:[%s264 + $0x40] sm:$0xff] %v1216
        %1253 = vst [vmem:[%s264 + $0x48] sm:$0xff] %v1217
        %1254 = vst [vmem:[%s264 + $0x50] sm:$0xff] %v1218
        %1255 = vst [vmem:[%s264 + $0x58] sm:$0xff] %v1219
        %1256 = vst [vmem:[%s264 + $0x60] sm:$0xff] %v1220
        %1257 = vst [vmem:[%s264 + $0x68] sm:$0xff] %v1221
        %1258 = vst [vmem:[%s264 + $0x70] sm:$0xff] %v1222
        %1259 = vst [vmem:[%s264 + $0x78] sm:$0xff] %v1223
        %1260 = vst [vmem:[%s264 + $0x80] sm:$0xff] %v1224
        %1261 = vst [vmem:[%s264 + $0x88] sm:$0xff] %v1225
        %1262 = vst [vmem:[%s264 + $0x90] sm:$0xff] %v1226
        %1263 = vst [vmem:[%s264 + $0x98] sm:$0xff] %v1227
        %1264 = vst [vmem:[%s264 + $0xa0] sm:$0xff] %v1228
        %1265 = vst [vmem:[%s264 + $0xa8] sm:$0xff] %v1229
        %1266 = vst [vmem:[%s264 + $0xb0] sm:$0xff] %v1230
        %1267 = vst [vmem:[%s264 + $0xb8] sm:$0xff] %v1231
        %1268 = vst [vmem:[%s264 + $0xc0] sm:$0xff] %v1232
        %1269 = vst [vmem:[%s264 + $0xc8] sm:$0xff] %v1233
        %1270 = vst [vmem:[%s264 + $0xd0] sm:$0xff] %v1234
        %1271 = vst [vmem:[%s264 + $0xd8] sm:$0xff] %v1235
        %1272 = vst [vmem:[%s264 + $0xe0] sm:$0xff] %v1236
        %1273 = vst [vmem:[%s264 + $0xe8] sm:$0xff] %v1237
        %1274 = vst [vmem:[%s264 + $0xf0] sm:$0xff] %v1238
        %1275 = vst [vmem:[%s264 + $0xf8] sm:$0xff] %v1239
      $region40: #{rsage_layer.1} parent=35 // pred_fallthru
        _
      %p1276 = scmp.gt.s32.totalorder %s20, 0
      // Predicated region
      $region41: #{rsage_layer.1} parent=35 // pred_check
        %p1277 = pneg %p1276
      $region42: #{rsage_layer.1} parent=35 // pred_check_branch
        %1279 = sbr.rel (%p1277) target = $region44
      $region43: #{rsage_layer.1} parent=35 // pred_region
        %v1280 = vld [vmem:[%s264] sm:$0xff]
        %v1281 = vld [vmem:[%s264 + $0x8] sm:$0xff]
        %v1282 = vld [vmem:[%s264 + $0x10] sm:$0xff]
        %v1283 = vld [vmem:[%s264 + $0x18] sm:$0xff]
        %v1284 = vld [vmem:[%s264 + $0x20] sm:$0xff]
        %v1285 = vld [vmem:[%s264 + $0x28] sm:$0xff]
        %v1286 = vld [vmem:[%s264 + $0x30] sm:$0xff]
        %v1287 = vld [vmem:[%s264 + $0x38] sm:$0xff]
        %v1288 = vld [vmem:[%s264 + $0x40] sm:$0xff]
        %v1289 = vld [vmem:[%s264 + $0x48] sm:$0xff]
        %v1290 = vld [vmem:[%s264 + $0x50] sm:$0xff]
        %v1291 = vld [vmem:[%s264 + $0x58] sm:$0xff]
        %v1292 = vld [vmem:[%s264 + $0x60] sm:$0xff]
        %v1293 = vld [vmem:[%s264 + $0x68] sm:$0xff]
        %v1294 = vld [vmem:[%s264 + $0x70] sm:$0xff]
        %v1295 = vld [vmem:[%s264 + $0x78] sm:$0xff]
        %v1296 = vld [vmem:[%s264 + $0x80] sm:$0xff]
        %v1297 = vld [vmem:[%s264 + $0x88] sm:$0xff]
        %v1298 = vld [vmem:[%s264 + $0x90] sm:$0xff]
        %v1299 = vld [vmem:[%s264 + $0x98] sm:$0xff]
        %v1300 = vld [vmem:[%s264 + $0xa0] sm:$0xff]
        %v1301 = vld [vmem:[%s264 + $0xa8] sm:$0xff]
        %v1302 = vld [vmem:[%s264 + $0xb0] sm:$0xff]
        %v1303 = vld [vmem:[%s264 + $0xb8] sm:$0xff]
        %v1304 = vld [vmem:[%s264 + $0xc0] sm:$0xff]
        %v1305 = vld [vmem:[%s264 + $0xc8] sm:$0xff]
        %v1306 = vld [vmem:[%s264 + $0xd0] sm:$0xff]
        %v1307 = vld [vmem:[%s264 + $0xd8] sm:$0xff]
        %v1308 = vld [vmem:[%s264 + $0xe0] sm:$0xff]
        %v1309 = vld [vmem:[%s264 + $0xe8] sm:$0xff]
        %v1310 = vld [vmem:[%s264 + $0xf0] sm:$0xff]
        %v1311 = vld [vmem:[%s264 + $0xf8] sm:$0xff]
        %v1312 = vadd.f32 %v1280, %v1208
        %v1313 = vadd.f32 %v1281, %v1209
        %v1314 = vadd.f32 %v1282, %v1210
        %v1315 = vadd.f32 %v1283, %v1211
        %v1316 = vadd.f32 %v1284, %v1212
        %v1317 = vadd.f32 %v1285, %v1213
        %v1318 = vadd.f32 %v1286, %v1214
        %v1319 = vadd.f32 %v1287, %v1215
        %v1320 = vadd.f32 %v1288, %v1216
        %v1321 = vadd.f32 %v1289, %v1217
        %v1322 = vadd.f32 %v1290, %v1218
        %v1323 = vadd.f32 %v1291, %v1219
        %v1324 = vadd.f32 %v1292, %v1220
        %v1325 = vadd.f32 %v1293, %v1221
        %v1326 = vadd.f32 %v1294, %v1222
        %v1327 = vadd.f32 %v1295, %v1223
        %v1328 = vadd.f32 %v1296, %v1224
        %v1329 = vadd.f32 %v1297, %v1225
        %v1330 = vadd.f32 %v1298, %v1226
        %v1331 = vadd.f32 %v1299, %v1227
        %v1332 = vadd.f32 %v1300, %v1228
        %v1333 = vadd.f32 %v1301, %v1229
        %v1334 = vadd.f32 %v1302, %v1230
        %v1335 = vadd.f32 %v1303, %v1231
        %v1336 = vadd.f32 %v1304, %v1232
        %v1337 = vadd.f32 %v1305, %v1233
        %v1338 = vadd.f32 %v1306, %v1234
        %v1339 = vadd.f32 %v1307, %v1235
        %v1340 = vadd.f32 %v1308, %v1236
        %v1341 = vadd.f32 %v1309, %v1237
        %v1342 = vadd.f32 %v1310, %v1238
        %v1343 = vadd.f32 %v1311, %v1239
        %1344 = vst [vmem:[%s264] sm:$0xff] %v1312
        %1345 = vst [vmem:[%s264 + $0x8] sm:$0xff] %v1313
        %1346 = vst [vmem:[%s264 + $0x10] sm:$0xff] %v1314
        %1347 = vst [vmem:[%s264 + $0x18] sm:$0xff] %v1315
        %1348 = vst [vmem:[%s264 + $0x20] sm:$0xff] %v1316
        %1349 = vst [vmem:[%s264 + $0x28] sm:$0xff] %v1317
        %1350 = vst [vmem:[%s264 + $0x30] sm:$0xff] %v1318
        %1351 = vst [vmem:[%s264 + $0x38] sm:$0xff] %v1319
        %1352 = vst [vmem:[%s264 + $0x40] sm:$0xff] %v1320
        %1353 = vst [vmem:[%s264 + $0x48] sm:$0xff] %v1321
        %1354 = vst [vmem:[%s264 + $0x50] sm:$0xff] %v1322
        %1355 = vst [vmem:[%s264 + $0x58] sm:$0xff] %v1323
        %1356 = vst [vmem:[%s264 + $0x60] sm:$0xff] %v1324
        %1357 = vst [vmem:[%s264 + $0x68] sm:$0xff] %v1325
        %1358 = vst [vmem:[%s264 + $0x70] sm:$0xff] %v1326
        %1359 = vst [vmem:[%s264 + $0x78] sm:$0xff] %v1327
        %1360 = vst [vmem:[%s264 + $0x80] sm:$0xff] %v1328
        %1361 = vst [vmem:[%s264 + $0x88] sm:$0xff] %v1329
        %1362 = vst [vmem:[%s264 + $0x90] sm:$0xff] %v1330
        %1363 = vst [vmem:[%s264 + $0x98] sm:$0xff] %v1331
        %1364 = vst [vmem:[%s264 + $0xa0] sm:$0xff] %v1332
        %1365 = vst [vmem:[%s264 + $0xa8] sm:$0xff] %v1333
        %1366 = vst [vmem:[%s264 + $0xb0] sm:$0xff] %v1334
        %1367 = vst [vmem:[%s264 + $0xb8] sm:$0xff] %v1335
        %1368 = vst [vmem:[%s264 + $0xc0] sm:$0xff] %v1336
        %1369 = vst [vmem:[%s264 + $0xc8] sm:$0xff] %v1337
        %1370 = vst [vmem:[%s264 + $0xd0] sm:$0xff] %v1338
        %1371 = vst [vmem:[%s264 + $0xd8] sm:$0xff] %v1339
        %1372 = vst [vmem:[%s264 + $0xe0] sm:$0xff] %v1340
        %1373 = vst [vmem:[%s264 + $0xe8] sm:$0xff] %v1341
        %1374 = vst [vmem:[%s264 + $0xf0] sm:$0xff] %v1342
        %1375 = vst [vmem:[%s264 + $0xf8] sm:$0xff] %v1343
      $region44: #{rsage_layer.1} parent=35 // pred_fallthru
        _
      %p1376 = scmp.eq.s32.totalorder %s20, 2
      // Predicated region
      $region45: #{rsage_layer.1} parent=35 // pred_check
        %p1377 = pneg %p1376
      $region46: #{rsage_layer.1} parent=35 // pred_check_branch
        %1379 = sbr.rel (%p1377) target = $region48
      $region47: #{rsage_layer.1} parent=35 // pred_region
        %v1380 = vld [vmem:[%s264] sm:$0xff]
        %v1381 = vld [vmem:[%s264 + $0x8] sm:$0xff]
        %v1382 = vld [vmem:[%s264 + $0x10] sm:$0xff]
        %v1383 = vld [vmem:[%s264 + $0x18] sm:$0xff]
        %v1384 = vld [vmem:[%s264 + $0x20] sm:$0xff]
        %v1385 = vld [vmem:[%s264 + $0x28] sm:$0xff]
        %v1386 = vld [vmem:[%s264 + $0x30] sm:$0xff]
        %v1387 = vld [vmem:[%s264 + $0x38] sm:$0xff]
        %v1388 = vld [vmem:[%s264 + $0x40] sm:$0xff]
        %v1389 = vld [vmem:[%s264 + $0x48] sm:$0xff]
        %v1390 = vld [vmem:[%s264 + $0x50] sm:$0xff]
        %v1391 = vld [vmem:[%s264 + $0x58] sm:$0xff]
        %v1392 = vld [vmem:[%s264 + $0x60] sm:$0xff]
        %v1393 = vld [vmem:[%s264 + $0x68] sm:$0xff]
        %v1394 = vld [vmem:[%s264 + $0x70] sm:$0xff]
        %v1395 = vld [vmem:[%s264 + $0x78] sm:$0xff]
        %v1396 = vld [vmem:[%s264 + $0x80] sm:$0xff]
        %v1397 = vld [vmem:[%s264 + $0x88] sm:$0xff]
        %v1398 = vld [vmem:[%s264 + $0x90] sm:$0xff]
        %v1399 = vld [vmem:[%s264 + $0x98] sm:$0xff]
        %v1400 = vld [vmem:[%s264 + $0xa0] sm:$0xff]
        %v1401 = vld [vmem:[%s264 + $0xa8] sm:$0xff]
        %v1402 = vld [vmem:[%s264 + $0xb0] sm:$0xff]
        %v1403 = vld [vmem:[%s264 + $0xb8] sm:$0xff]
        %v1404 = vld [vmem:[%s264 + $0xc0] sm:$0xff]
        %v1405 = vld [vmem:[%s264 + $0xc8] sm:$0xff]
        %v1406 = vld [vmem:[%s264 + $0xd0] sm:$0xff]
        %v1407 = vld [vmem:[%s264 + $0xd8] sm:$0xff]
        %v1408 = vld [vmem:[%s264 + $0xe0] sm:$0xff]
        %v1409 = vld [vmem:[%s264 + $0xe8] sm:$0xff]
        %v1410 = vld [vmem:[%s264 + $0xf0] sm:$0xff]
        %v1411 = vld [vmem:[%s264 + $0xf8] sm:$0xff]
        %v1412 = vmul.f32 %v1380, 0.33333334
        %v1413 = vmul.f32 %v1381, 0.33333334
        %v1414 = vmul.f32 %v1382, 0.33333334
        %v1415 = vmul.f32 %v1383, 0.33333334
        %v1416 = vmul.f32 %v1384, 0.33333334
        %v1417 = vmul.f32 %v1385, 0.33333334
        %v1418 = vmul.f32 %v1386, 0.33333334
        %v1419 = vmul.f32 %v1387, 0.33333334
        %v1420 = vmul.f32 %v1388, 0.33333334
        %v1421 = vmul.f32 %v1389, 0.33333334
        %v1422 = vmul.f32 %v1390, 0.33333334
        %v1423 = vmul.f32 %v1391, 0.33333334
        %v1424 = vmul.f32 %v1392, 0.33333334
        %v1425 = vmul.f32 %v1393, 0.33333334
        %v1426 = vmul.f32 %v1394, 0.33333334
        %v1427 = vmul.f32 %v1395, 0.33333334
        %v1428 = vmul.f32 %v1396, 0.33333334
        %v1429 = vmul.f32 %v1397, 0.33333334
        %v1430 = vmul.f32 %v1398, 0.33333334
        %v1431 = vmul.f32 %v1399, 0.33333334
        %v1432 = vmul.f32 %v1400, 0.33333334
        %v1433 = vmul.f32 %v1401, 0.33333334
        %v1434 = vmul.f32 %v1402, 0.33333334
        %v1435 = vmul.f32 %v1403, 0.33333334
        %v1436 = vmul.f32 %v1404, 0.33333334
        %v1437 = vmul.f32 %v1405, 0.33333334
        %v1438 = vmul.f32 %v1406, 0.33333334
        %v1439 = vmul.f32 %v1407, 0.33333334
        %v1440 = vmul.f32 %v1408, 0.33333334
        %v1441 = vmul.f32 %v1409, 0.33333334
        %v1442 = vmul.f32 %v1410, 0.33333334
        %v1443 = vmul.f32 %v1411, 0.33333334
        %1444 = vst [vmem:[%s264] sm:$0xff] %v1412
        %1445 = vst [vmem:[%s264 + $0x8] sm:$0xff] %v1413
        %1446 = vst [vmem:[%s264 + $0x10] sm:$0xff] %v1414
        %1447 = vst [vmem:[%s264 + $0x18] sm:$0xff] %v1415
        %1448 = vst [vmem:[%s264 + $0x20] sm:$0xff] %v1416
        %1449 = vst [vmem:[%s264 + $0x28] sm:$0xff] %v1417
        %1450 = vst [vmem:[%s264 + $0x30] sm:$0xff] %v1418
        %1451 = vst [vmem:[%s264 + $0x38] sm:$0xff] %v1419
        %1452 = vst [vmem:[%s264 + $0x40] sm:$0xff] %v1420
        %1453 = vst [vmem:[%s264 + $0x48] sm:$0xff] %v1421
        %1454 = vst [vmem:[%s264 + $0x50] sm:$0xff] %v1422
        %1455 = vst [vmem:[%s264 + $0x58] sm:$0xff] %v1423
        %1456 = vst [vmem:[%s264 + $0x60] sm:$0xff] %v1424
        %1457 = vst [vmem:[%s264 + $0x68] sm:$0xff] %v1425
        %1458 = vst [vmem:[%s264 + $0x70] sm:$0xff] %v1426
        %1459 = vst [vmem:[%s264 + $0x78] sm:$0xff] %v1427
        %1460 = vst [vmem:[%s264 + $0x80] sm:$0xff] %v1428
        %1461 = vst [vmem:[%s264 + $0x88] sm:$0xff] %v1429
        %1462 = vst [vmem:[%s264 + $0x90] sm:$0xff] %v1430
        %1463 = vst [vmem:[%s264 + $0x98] sm:$0xff] %v1431
        %1464 = vst [vmem:[%s264 + $0xa0] sm:$0xff] %v1432
        %1465 = vst [vmem:[%s264 + $0xa8] sm:$0xff] %v1433
        %1466 = vst [vmem:[%s264 + $0xb0] sm:$0xff] %v1434
        %1467 = vst [vmem:[%s264 + $0xb8] sm:$0xff] %v1435
        %1468 = vst [vmem:[%s264 + $0xc0] sm:$0xff] %v1436
        %1469 = vst [vmem:[%s264 + $0xc8] sm:$0xff] %v1437
        %1470 = vst [vmem:[%s264 + $0xd0] sm:$0xff] %v1438
        %1471 = vst [vmem:[%s264 + $0xd8] sm:$0xff] %v1439
        %1472 = vst [vmem:[%s264 + $0xe0] sm:$0xff] %v1440
        %1473 = vst [vmem:[%s264 + $0xe8] sm:$0xff] %v1441
        %1474 = vst [vmem:[%s264 + $0xf0] sm:$0xff] %v1442
        %1475 = vst [vmem:[%s264 + $0xf8] sm:$0xff] %v1443
      $region48: #{rsage_layer.1} parent=35 // pred_fallthru
        _
      %s1476 = smul.u32 32, %s19
      %p1477 = scmp.lt.s32.totalorder %s1476, 63
      %s1478 = scalar_select %p1477, %s1476, 63
      %s1479 = smul.addr %s1478, 8
      %s1480 = scalar_lea.vmem %s4, %s1479
      // Predicated region
      $region49: #{rsage_layer.1} parent=35 // pred_check
        %p1481 = pneg %p143
      $region50: #{rsage_layer.1} parent=35 // pred_check_branch
        %1483 = sbr.rel (%p1481) target = $region52
      $region51: #{rsage_layer.1} parent=35 // pred_region
        %s1484 = smul.u32 32, %s19
      $region52: #{rsage_layer.1} parent=35 // pred_fallthru
        _
    $region36: #{rsage_layer.1} parent=5 // pred_fallthru
      _
    %p1485 = scmp.le.s32.totalorder 2, %s10
    // Predicated region
    $region53: #{rsage_layer.1} parent=5 // pred_check
      %p1486 = pneg %p1485
    $region54: #{rsage_layer.1} parent=5 // pred_check_branch
      %1488 = sbr.rel (%p1486) target = $region56
    $region55: #{rsage_layer.1} parent=5 // pred_region
      %s1489 = ssub.s32 %s10, 2
      // Predicated region
      $region57: #{rsage_layer.1} parent=55 // pred_check
        %p1490 = pneg %p149
      $region58: #{rsage_layer.1} parent=55 // pred_check_branch
        %1492 = sbr.rel (%p1490) target = $region60
      $region59: #{rsage_layer.1} parent=55 // pred_region
        %s1493 = smul.u32 32, %s21
        %p1494 = scmp.lt.s32.totalorder %s1493, 63
        %s1495 = scalar_select %p1494, %s1493, 63
        %s1496 = smul.addr %s1495, 8
        %s1497 = scalar_lea.vmem %s4, %s1496
      $region60: #{rsage_layer.1} parent=55 // pred_fallthru
        _
    $region56: #{rsage_layer.1} parent=5 // pred_fallthru
      _
  $region6: #{rsage_layer.1} parent=0 // loop_footer
    %s14 = sadd.s32 1, %s10
  $region7: #{rsage_layer.1} parent=0 // loop_footer_branch
    %9 = sbr.rel target = $region3
  $region8: #{rsage_layer.1} parent=0 // loop_exit
    _

</llo_original>
